<compile_context>
chip_gen: v7x
topology: tpu7x:2x2x1
jax: 0.10.0
libtpu: 0.0.40
codegen_flags: <defaults>
</compile_context>

<pallas_src>
import jax
import jax.numpy as jnp
from jax.experimental import pallas as pl
from jax.experimental.pallas import tpu as pltpu


def _round_up(x, m):
    return ((x + m - 1) // m) * m


def _pick_tile(total, preferred, step):
    """Largest multiple of `step` that divides `total`, capped near `preferred`."""
    t = max(step, (min(total, preferred) // step) * step)
    while total % t != 0:
        t -= step
    return t


def _vmem_limit_bytes(io_bytes, scratch_bytes=0):
    """Worst-case (double-buffered) block footprint + scratch + margin.

    Floor at the v5e default scoped limit, cap at v7x physical VMEM (64 MiB).
    """
    need = 2 * io_bytes + scratch_bytes + (2 << 20)
    return int(min(64 << 20, max(need, 16 << 20)))


# --------------------------------------------------------------------------- #
# Kernel 1: LSTM recurrence (input-side matmul hoisted), emits bf16 hidden
# states (S, Bblk, Hp) for one batch shard.
# --------------------------------------------------------------------------- #
def _lstm_kernel(x_ref, wih_ref, whh_ref, b_ref, h_out_ref, gx_ref):
    S, Bblk, Ep = x_ref.shape
    Hp = whh_ref.shape[0]

    # Hoisted input-side matmul: (S*Bblk, Ep) x (Ep, 4Hp) fills the MXU once,
    # instead of a tiny Bblk-row matmul on the serial critical path per step.
    x_flat = x_ref[...].reshape(S * Bblk, Ep)                      # bf16
    gx = jnp.dot(x_flat, wih_ref[...], preferred_element_type=jnp.float32)
    gx_ref[...] = (gx + b_ref[...]).reshape(S, Bblk, 4 * Hp)       # f32 scratch

    whh = whh_ref[...]                                             # (Hp, 4Hp) bf16

    def step(t, carry):
        h_prev, c_prev = carry                     # bf16 (Bblk,Hp), f32 (Bblk,Hp)
        gates = (jnp.dot(h_prev, whh, preferred_element_type=jnp.float32)
                 + gx_ref[t])                      # f32 (Bblk, 4Hp)

        # 128-lane-aligned gate slices (nn.LSTM gate order: i, f, g, o).
        i_g = jax.nn.sigmoid(gates[:, 0 * Hp:1 * Hp])
        f_g = jax.nn.sigmoid(gates[:, 1 * Hp:2 * Hp])
        g_g = jnp.tanh(gates[:, 2 * Hp:3 * Hp])
        o_g = jax.nn.sigmoid(gates[:, 3 * Hp:4 * Hp])

        c_new = f_g * c_prev + i_g * g_g
        h_new = (o_g * jnp.tanh(c_new)).astype(jnp.bfloat16)

        h_out_ref[t] = h_new                       # bf16 store, no extra pass
        return (h_new, c_new)

    h0 = jnp.zeros((Bblk, Hp), jnp.bfloat16)
    c0 = jnp.zeros((Bblk, Hp), jnp.float32)
    jax.lax.fori_loop(0, S, step, (h0, c0), unroll=min(S, 8))


# --------------------------------------------------------------------------- #
# Kernel 2: output projection  logits = h @ W_lin^T + b_lin  (MXU-tiled)
# --------------------------------------------------------------------------- #
def _proj_kernel(h_ref, w_ref, b_ref, o_ref):
    o_ref[...] = (jnp.dot(h_ref[...], w_ref[...],
                          preferred_element_type=jnp.float32)
                  + b_ref[...]).astype(o_ref.dtype)


# --------------------------------------------------------------------------- #
# Wrapper
# --------------------------------------------------------------------------- #
def decoder_rnn_forward(features, captions, params):
    """features: (B, E) float32; captions: (B, S) int32. Returns (B, S, V) f32."""
    emb_table = params["embeddings"]          # (V, E)
    w_ih = params["w_ih"]                     # (4H, E)
    w_hh = params["w_hh"]                     # (4H, H)
    b_ih = params["b_ih"]                     # (4H,)
    b_hh = params["b_hh"]                     # (4H,)
    w_lin = params["w_lin"]                   # (V, H)
    b_lin = params["b_lin"]                   # (V,)

    B, E = features.shape
    S = captions.shape[1]
    H = w_hh.shape[1]
    V = w_lin.shape[0]

    # Padded lane/sublane aligned sizes.
    Bp = _round_up(B, 8)
    Ep = _round_up(E, 128)
    Hp = _round_up(H, 128)
    Vp = _round_up(V, 128)

    # ---- glue (plain JAX): embedding lookup + concat, time-major, padded ----
    # PyTorch: linear(lstm(cat(features, emb(captions))))[:, :-1, :]
    # => only the first S LSTM steps (features + first S-1 caption tokens)
    #    reach the output; the dropped last step is never computed.
    cap_emb = emb_table[captions[:, : S - 1]]                          # (B, S-1, E)
    embed = jnp.concatenate(
        [features[:, None, :].astype(cap_emb.dtype), cap_emb], axis=1)  # (B, S, E)
    x_tbe = jnp.transpose(embed, (1, 0, 2))                            # (S, B, E)
    x_tbe = jnp.pad(x_tbe, ((0, 0), (0, Bp - B), (0, Ep - E)))
    x_tbe = x_tbe.astype(jnp.bfloat16)

    # ---- weight re-layout: per-gate 128-lane-aligned blocks, bf16 ----
    def gate_weight(w, in_dim, in_dim_p):
        # (4H, in) -> (in_p, 4*Hp) transposed, gate g in columns [g*Hp, g*Hp+H)
        w4 = w.reshape(4, H, in_dim)
        w4 = jnp.pad(w4, ((0, 0), (0, Hp - H), (0, in_dim_p - in_dim)))
        return jnp.transpose(w4, (2, 0, 1)).reshape(in_dim_p, 4 * Hp)

    wih_p = gate_weight(w_ih, E, Ep).astype(jnp.bfloat16)              # (Ep, 4Hp)
    whh_p = gate_weight(w_hh, H, Hp).astype(jnp.bfloat16)              # (Hp, 4Hp)
    bias_p = jnp.pad((b_ih + b_hh).reshape(4, H), ((0, 0), (0, Hp - H)))
    bias_p = bias_p.reshape(1, 4 * Hp).astype(jnp.float32)             # (1, 4Hp)

    wlin_p = jnp.pad(w_lin.T, ((0, Hp - H), (0, Vp - V))).astype(jnp.bfloat16)
    blin_p = jnp.pad(b_lin, (0, Vp - V)).reshape(1, Vp).astype(jnp.float32)

    # ---- kernel 1: LSTM recurrence, batch-parallel shards (v7x: 2 TCs) ----
    num_shards = 2 if (Bp % 16 == 0) else 1
    Bblk = Bp // num_shards

    lstm_io = (S * Bblk * Ep * 2 + Ep * 4 * Hp * 2 + Hp * 4 * Hp * 2
               + 4 * Hp * 4 + S * Bblk * Hp * 2)
    lstm_scratch = S * Bblk * 4 * Hp * 4

    h_all = pl.pallas_call(
        _lstm_kernel,
        out_shape=jax.ShapeDtypeStruct((S, Bp, Hp), jnp.bfloat16),
        grid_spec=pltpu.PrefetchScalarGridSpec(
            num_scalar_prefetch=0,
            grid=(num_shards,),
            in_specs=[
                pl.BlockSpec((S, Bblk, Ep), lambda b: (0, b, 0)),   # x shard
                pl.BlockSpec((Ep, 4 * Hp), lambda b: (0, 0)),       # W_ih^T (fetched once)
                pl.BlockSpec((Hp, 4 * Hp), lambda b: (0, 0)),       # W_hh^T (fetched once)
                pl.BlockSpec((1, 4 * Hp), lambda b: (0, 0)),        # b_ih + b_hh
            ],
            out_specs=pl.BlockSpec((S, Bblk, Hp), lambda b: (0, b, 0)),
            scratch_shapes=[pltpu.VMEM((S, Bblk, 4 * Hp), jnp.float32)],  # gates_x
        ),
        compiler_params=pltpu.CompilerParams(
            dimension_semantics=("parallel",),
            vmem_limit_bytes=_vmem_limit_bytes(lstm_io, lstm_scratch),
        ),
    )(x_tbe, wih_p, whh_p, bias_p)

    # ---- kernel 2: hoisted vocab projection over all kept timesteps ----
    M = S * Bp                               # multiple of 8 (Bp is)
    tm = M if M <= 512 else 512              # 512 = 2x256 MXU rows, 16-aligned
    Mp = _round_up(M, tm)
    tn = _pick_tile(Vp, 512, 128)

    h_flat = h_all.reshape(M, Hp)            # bf16, no astype pass
    if Mp != M:
        h_flat = jnp.pad(h_flat, ((0, Mp - M), (0, 0)))

    proj_io = tm * Hp * 2 + Hp * tn * 2 + tn * 4 + tm * tn * 4

    logits = pl.pallas_call(
        _proj_kernel,
        out_shape=jax.ShapeDtypeStruct((Mp, Vp), jnp.float32),
        grid_spec=pltpu.PrefetchScalarGridSpec(
            num_scalar_prefetch=0,
            # vocab axis OUTER: each (Hp, tn) W_lin tile is DMA'd exactly once;
            # only the small hidden-row blocks are re-read per vocab tile.
            grid=(Vp // tn, Mp // tm),
            in_specs=[
                pl.BlockSpec((tm, Hp), lambda v, r: (r, 0)),        # hidden rows
                pl.BlockSpec((Hp, tn), lambda v, r: (0, v)),        # W_lin^T tile
                pl.BlockSpec((1, tn), lambda v, r: (0, v)),         # b_lin tile
            ],
            out_specs=pl.BlockSpec((tm, tn), lambda v, r: (r, v)),
        ),
        compiler_params=pltpu.CompilerParams(
            dimension_semantics=("parallel", "parallel"),
            vmem_limit_bytes=_vmem_limit_bytes(proj_io),
        ),
    )(h_flat, wlin_p, blin_p)

    # Slice padding off BEFORE the transpose (avoids moving padded rows/lanes).
    out = jnp.transpose(logits[:M].reshape(S, Bp, Vp)[:, :B, :V], (1, 0, 2))
    return out                                                       # (B, S, V)


def init_params(key, embed_size, hidden_size, vocab_size):
    """Deterministic synthetic parameters (shapes match nn.LSTM / nn.Embedding / nn.Linear)."""
    ks = jax.random.split(key, 7)
    k_lstm = 1.0 / jnp.sqrt(hidden_size)
    k_lin = 1.0 / jnp.sqrt(hidden_size)
    u = lambda k, shape, s: jax.random.uniform(k, shape, jnp.float32, -s, s)
    return {
        "embeddings": jax.random.normal(ks[0], (vocab_size, embed_size), jnp.float32),
        "w_ih": u(ks[1], (4 * hidden_size, embed_size), k_lstm),
        "w_hh": u(ks[2], (4 * hidden_size, hidden_size), k_lstm),
        "b_ih": u(ks[3], (4 * hidden_size,), k_lstm),
        "b_hh": u(ks[4], (4 * hidden_size,), k_lstm),
        "w_lin": u(ks[5], (vocab_size, hidden_size), k_lin),
        "b_lin": u(ks[6], (vocab_size,), k_lin),
    }


if __name__ == "__main__":
    # Small shapes consistent with the module's forward.
    batch, embed_size, hidden_size, vocab_size, seq = 2, 32, 32, 128, 8

    key = jax.random.PRNGKey(0)
    k_feat, k_cap, k_param = jax.random.split(key, 3)

    params = init_params(k_param, embed_size, hidden_size, vocab_size)
    features = jax.random.normal(k_feat, (batch, embed_size), jnp.float32)
    captions = jax.random.randint(k_cap, (batch, seq), 0, vocab_size, jnp.int32)

    out = jax.jit(decoder_rnn_forward)(features, captions, params)  # (B, seq, vocab)
    jax.block_until_ready(out)

    assert out.shape == (batch, seq, vocab_size), out.shape
    assert bool(jnp.all(jnp.isfinite(out)))
    print("KERNEL_OK")
</pallas_src>

<mosaic_0001>
module attributes {stable_mosaic.version = 11 : i64} {
  func.func @_proj_kernel(%arg0: i32, %arg1: i32, %arg2: memref<64x128xbf16, #tpu.memory_space<vmem>>, %arg3: memref<128x128xbf16, #tpu.memory_space<vmem>>, %arg4: memref<1x128xf32, #tpu.memory_space<vmem>>, %arg5: memref<64x128xf32, #tpu.memory_space<vmem>>) attributes {dimension_semantics = [#tpu.dimension_semantics<parallel>, #tpu.dimension_semantics<parallel>], iteration_bounds = array<i64: 1, 1>, scalar_prefetch = 0 : i64, scratch_operands = 0 : i64, tpu.core_type = #tpu.core_type<tc>, window_params = [{transform_indices = @transform_0, window_bounds = array<i64: 64, 128>}, {transform_indices = @transform_1, window_bounds = array<i64: 128, 128>}, {transform_indices = @transform_2, window_bounds = array<i64: 1, 128>}, {transform_indices = @transform_3, window_bounds = array<i64: 64, 128>}]} {
    %c0 = arith.constant 0 : index
    %c0_0 = arith.constant 0 : index
    %0 = vector.load %arg2[%c0, %c0_0] : memref<64x128xbf16, #tpu.memory_space<vmem>>, vector<64x128xbf16>
    %c0_1 = arith.constant 0 : index
    %c0_2 = arith.constant 0 : index
    %1 = vector.load %arg3[%c0_1, %c0_2] : memref<128x128xbf16, #tpu.memory_space<vmem>>, vector<128x128xbf16>
    %cst = arith.constant dense<0.000000e+00> : vector<64x128xf32>
    %2 = tpu.matmul %0, %1, %cst {dimension_numbers = #tpu.dot_dimension_numbers<[1], [0], [0], [1], [0, 0, 1, 1], [], []>} : vector<64x128xbf16>, vector<128x128xbf16>, vector<64x128xf32> -> vector<64x128xf32>
    %c0_3 = arith.constant 0 : index
    %c0_4 = arith.constant 0 : index
    %3 = vector.load %arg4[%c0_3, %c0_4] : memref<1x128xf32, #tpu.memory_space<vmem>>, vector<1x128xf32>
    %4 = vector.broadcast %3 : vector<1x128xf32> to vector<64x128xf32>
    %5 = arith.addf %2, %4 : vector<64x128xf32>
    %c0_5 = arith.constant 0 : index
    %c0_6 = arith.constant 0 : index
    %6 = vector.load %arg5[%c0_5, %c0_6] : memref<64x128xf32, #tpu.memory_space<vmem>>, vector<64x128xf32>
    tpu.vector_store %arg5[%c0_5, %c0_6], %5 {strides = array<i32>} : memref<64x128xf32, #tpu.memory_space<vmem>>, vector<64x128xf32>,
    return
  }
  func.func @transform_0(%arg0: i32, %arg1: i32) -> (i32, i32) {
    %c0_i32 = arith.constant 0 : i32
    %c0_i32_0 = arith.constant 0 : i32
    return %arg1, %c0_i32 : i32, i32
  }
  func.func @transform_1(%arg0: i32, %arg1: i32) -> (i32, i32) {
    %c0_i32 = arith.constant 0 : i32
    %c0_i32_0 = arith.constant 0 : i32
    return %c0_i32, %arg0 : i32, i32
  }
  func.func @transform_2(%arg0: i32, %arg1: i32) -> (i32, i32) {
    %c0_i32 = arith.constant 0 : i32
    %c0_i32_0 = arith.constant 0 : i32
    return %c0_i32, %arg0 : i32, i32
  }
  func.func @transform_3(%arg0: i32, %arg1: i32) -> (i32, i32) {
    %c0_i32 = arith.constant 0 : i32
    return %arg1, %arg0 : i32, i32
  }
}

module attributes {stable_mosaic.version = 11 : i64} {
  func.func @_lstm_kernel(%arg0: i32, %arg1: memref<8x8x128xbf16, #tpu.memory_space<vmem>>, %arg2: memref<128x512xbf16, #tpu.memory_space<vmem>>, %arg3: memref<128x512xbf16, #tpu.memory_space<vmem>>, %arg4: memref<1x512xf32, #tpu.memory_space<vmem>>, %arg5: memref<8x8x128xbf16, #tpu.memory_space<vmem>>, %arg6: memref<8x8x512xf32, #tpu.memory_space<vmem>>) attributes {dimension_semantics = [#tpu.dimension_semantics<parallel>], iteration_bounds = array<i64: 1>, scalar_prefetch = 0 : i64, scratch_operands = 1 : i64, tpu.core_type = #tpu.core_type<tc>, window_params = [{transform_indices = @transform_0, window_bounds = array<i64: 8, 8, 128>}, {pipeline_mode = #tpu.pipeline_mode<synchronous>, transform_indices = @transform_1, window_bounds = array<i64: 128, 512>}, {pipeline_mode = #tpu.pipeline_mode<synchronous>, transform_indices = @transform_2, window_bounds = array<i64: 128, 512>}, {pipeline_mode = #tpu.pipeline_mode<synchronous>, transform_indices = @transform_3, window_bounds = array<i64: 1, 512>}, {transform_indices = @transform_4, window_bounds = array<i64: 8, 8, 128>}]} {
    %c0 = arith.constant 0 : index
    %c0_0 = arith.constant 0 : index
    %c0_1 = arith.constant 0 : index
    %0 = vector.load %arg1[%c0, %c0_0, %c0_1] : memref<8x8x128xbf16, #tpu.memory_space<vmem>>, vector<8x8x128xbf16>
    %1 = vector.shape_cast %0 : vector<8x8x128xbf16> to vector<64x128xbf16>
    %c0_2 = arith.constant 0 : index
    %c0_3 = arith.constant 0 : index
    %2 = vector.load %arg2[%c0_2, %c0_3] : memref<128x512xbf16, #tpu.memory_space<vmem>>, vector<128x512xbf16>
    %cst = arith.constant dense<0.000000e+00> : vector<64x512xf32>
    %3 = tpu.matmul %1, %2, %cst {dimension_numbers = #tpu.dot_dimension_numbers<[1], [0], [0], [1], [0, 0, 1, 1], [], []>} : vector<64x128xbf16>, vector<128x512xbf16>, vector<64x512xf32> -> vector<64x512xf32>
    %c0_4 = arith.constant 0 : index
    %c0_5 = arith.constant 0 : index
    %4 = vector.load %arg4[%c0_4, %c0_5] : memref<1x512xf32, #tpu.memory_space<vmem>>, vector<1x512xf32>
    %5 = vector.broadcast %4 : vector<1x512xf32> to vector<64x512xf32>
    %6 = arith.addf %3, %5 : vector<64x512xf32>
    %7 = vector.shape_cast %6 : vector<64x512xf32> to vector<8x8x512xf32>
    %c0_6 = arith.constant 0 : index
    %c0_7 = arith.constant 0 : index
    %c0_8 = arith.constant 0 : index
    %8 = vector.load %arg6[%c0_6, %c0_7, %c0_8] : memref<8x8x512xf32, #tpu.memory_space<vmem>>, vector<8x8x512xf32>
    tpu.vector_store %arg6[%c0_6, %c0_7, %c0_8], %7 {strides = array<i32>} : memref<8x8x512xf32, #tpu.memory_space<vmem>>, vector<8x8x512xf32>,
    %c0_9 = arith.constant 0 : index
    %c0_10 = arith.constant 0 : index
    %9 = vector.load %arg3[%c0_9, %c0_10] : memref<128x512xbf16, #tpu.memory_space<vmem>>, vector<128x512xbf16>
    %cst_11 = arith.constant 0.000000e+00 : bf16
    %10 = vector.broadcast %cst_11 : bf16 to vector<8x128xbf16>
    %cst_12 = arith.constant 0.000000e+00 : f32
    %11 = vector.broadcast %cst_12 : f32 to vector<8x128xf32>
    %c0_i32 = arith.constant 0 : i32
    %cst_13 = arith.constant dense<0.000000e+00> : vector<8x512xf32>
    %12 = tpu.matmul %10, %9, %cst_13 {dimension_numbers = #tpu.dot_dimension_numbers<[1], [0], [0], [1], [0, 0, 1, 1], [], []>} : vector<8x128xbf16>, vector<128x512xbf16>, vector<8x512xf32> -> vector<8x512xf32>
    %13 = arith.index_cast %c0_i32 : i32 to index
    %c0_14 = arith.constant 0 : index
    %c0_15 = arith.constant 0 : index
    %14 = vector.load %arg6[%13, %c0_14, %c0_15] : memref<8x8x512xf32, #tpu.memory_space<vmem>>, vector<1x8x512xf32>
    %15 = vector.shape_cast %14 : vector<1x8x512xf32> to vector<8x512xf32>
    %16 = arith.addf %12, %15 : vector<8x512xf32>
    %17 = vector.extract_strided_slice %16 {offsets = [0, 0], sizes = [8, 128], strides = [1, 1]} : vector<8x512xf32> to vector<8x128xf32>
    %18 = arith.negf %17 : vector<8x128xf32>
    %19 = math.exp %18 : vector<8x128xf32>
    %cst_16 = arith.constant 1.000000e+00 : f32
    %20 = vector.broadcast %cst_16 : f32 to vector<8x128xf32>
    %21 = arith.addf %20, %19 : vector<8x128xf32>
    %22 = arith.divf %20, %21 : vector<8x128xf32>
    %23 = vector.extract_strided_slice %16 {offsets = [0, 128], sizes = [8, 128], strides = [1, 1]} : vector<8x512xf32> to vector<8x128xf32>
    %24 = arith.negf %23 : vector<8x128xf32>
    %25 = math.exp %24 : vector<8x128xf32>
    %cst_17 = arith.constant 1.000000e+00 : f32
    %26 = vector.broadcast %cst_17 : f32 to vector<8x128xf32>
    %27 = arith.addf %26, %25 : vector<8x128xf32>
    %28 = arith.divf %26, %27 : vector<8x128xf32>
    %29 = vector.extract_strided_slice %16 {offsets = [0, 256], sizes = [8, 128], strides = [1, 1]} : vector<8x512xf32> to vector<8x128xf32>
    %30 = math.tanh %29 : vector<8x128xf32>
    %31 = vector.extract_strided_slice %16 {offsets = [0, 384], sizes = [8, 128], strides = [1, 1]} : vector<8x512xf32> to vector<8x128xf32>
    %32 = arith.negf %31 : vector<8x128xf32>
    %33 = math.exp %32 : vector<8x128xf32>
    %cst_18 = arith.constant 1.000000e+00 : f32
    %34 = vector.broadcast %cst_18 : f32 to vector<8x128xf32>
    %35 = arith.addf %34, %33 : vector<8x128xf32>
    %36 = arith.divf %34, %35 : vector<8x128xf32>
    %37 = arith.mulf %28, %11 : vector<8x128xf32>
    %38 = arith.mulf %22, %30 : vector<8x128xf32>
    %39 = arith.addf %37, %38 : vector<8x128xf32>
    %40 = math.tanh %39 : vector<8x128xf32>
    %41 = arith.mulf %36, %40 : vector<8x128xf32>
    %42 = arith.truncf %41 : vector<8x128xf32> to vector<8x128xbf16>
    %43 = arith.index_cast %c0_i32 : i32 to index
    %c0_19 = arith.constant 0 : index
    %c0_20 = arith.constant 0 : index
    %44 = vector.load %arg5[%43, %c0_19, %c0_20] : memref<8x8x128xbf16, #tpu.memory_space<vmem>>, vector<1x8x128xbf16>
    %45 = vector.shape_cast %44 : vector<1x8x128xbf16> to vector<8x128xbf16>
    %46 = vector.shape_cast %42 : vector<8x128xbf16> to vector<1x8x128xbf16>
    tpu.vector_store %arg5[%43, %c0_19, %c0_20], %46 {strides = array<i32>} : memref<8x8x128xbf16, #tpu.memory_space<vmem>>, vector<1x8x128xbf16>,
    %c1_i32 = arith.constant 1 : i32
    %cst_21 = arith.constant dense<0.000000e+00> : vector<8x512xf32>
    %47 = tpu.matmul %42, %9, %cst_21 {dimension_numbers = #tpu.dot_dimension_numbers<[1], [0], [0], [1], [0, 0, 1, 1], [], []>} : vector<8x128xbf16>, vector<128x512xbf16>, vector<8x512xf32> -> vector<8x512xf32>
    %48 = arith.index_cast %c1_i32 : i32 to index
    %c0_22 = arith.constant 0 : index
    %c0_23 = arith.constant 0 : index
    %49 = vector.load %arg6[%48, %c0_22, %c0_23] : memref<8x8x512xf32, #tpu.memory_space<vmem>>, vector<1x8x512xf32>
    %50 = vector.shape_cast %49 : vector<1x8x512xf32> to vector<8x512xf32>
    %51 = arith.addf %47, %50 : vector<8x512xf32>
    %52 = vector.extract_strided_slice %51 {offsets = [0, 0], sizes = [8, 128], strides = [1, 1]} : vector<8x512xf32> to vector<8x128xf32>
    %53 = arith.negf %52 : vector<8x128xf32>
    %54 = math.exp %53 : vector<8x128xf32>
    %cst_24 = arith.constant 1.000000e+00 : f32
    %55 = vector.broadcast %cst_24 : f32 to vector<8x128xf32>
    %56 = arith.addf %55, %54 : vector<8x128xf32>
    %57 = arith.divf %55, %56 : vector<8x128xf32>
    %58 = vector.extract_strided_slice %51 {offsets = [0, 128], sizes = [8, 128], strides = [1, 1]} : vector<8x512xf32> to vector<8x128xf32>
    %59 = arith.negf %58 : vector<8x128xf32>
    %60 = math.exp %59 : vector<8x128xf32>
    %cst_25 = arith.constant 1.000000e+00 : f32
    %61 = vector.broadcast %cst_25 : f32 to vector<8x128xf32>
    %62 = arith.addf %61, %60 : vector<8x128xf32>
    %63 = arith.divf %61, %62 : vector<8x128xf32>
    %64 = vector.extract_strided_slice %51 {offsets = [0, 256], sizes = [8, 128], strides = [1, 1]} : vector<8x512xf32> to vector<8x128xf32>
    %65 = math.tanh %64 : vector<8x128xf32>
    %66 = vector.extract_strided_slice %51 {offsets = [0, 384], sizes = [8, 128], strides = [1, 1]} : vector<8x512xf32> to vector<8x128xf32>
    %67 = arith.negf %66 : vector<8x128xf32>
    %68 = math.exp %67 : vector<8x128xf32>
    %cst_26 = arith.constant 1.000000e+00 : f32
    %69 = vector.broadcast %cst_26 : f32 to vector<8x128xf32>
    %70 = arith.addf %69, %68 : vector<8x128xf32>
    %71 = arith.divf %69, %70 : vector<8x128xf32>
    %72 = arith.mulf %63, %39 : vector<8x128xf32>
    %73 = arith.mulf %57, %65 : vector<8x128xf32>
    %74 = arith.addf %72, %73 : vector<8x128xf32>
    %75 = math.tanh %74 : vector<8x128xf32>
    %76 = arith.mulf %71, %75 : vector<8x128xf32>
    %77 = arith.truncf %76 : vector<8x128xf32> to vector<8x128xbf16>
    %78 = arith.index_cast %c1_i32 : i32 to index
    %c0_27 = arith.constant 0 : index
    %c0_28 = arith.constant 0 : index
    %79 = vector.load %arg5[%78, %c0_27, %c0_28] : memref<8x8x128xbf16, #tpu.memory_space<vmem>>, vector<1x8x128xbf16>
    %80 = vector.shape_cast %79 : vector<1x8x128xbf16> to vector<8x128xbf16>
    %81 = vector.shape_cast %77 : vector<8x128xbf16> to vector<1x8x128xbf16>
    tpu.vector_store %arg5[%78, %c0_27, %c0_28], %81 {strides = array<i32>} : memref<8x8x128xbf16, #tpu.memory_space<vmem>>, vector<1x8x128xbf16>,
    %c2_i32 = arith.constant 2 : i32
    %cst_29 = arith.constant dense<0.000000e+00> : vector<8x512xf32>
    %82 = tpu.matmul %77, %9, %cst_29 {dimension_numbers = #tpu.dot_dimension_numbers<[1], [0], [0], [1], [0, 0, 1, 1], [], []>} : vector<8x128xbf16>, vector<128x512xbf16>, vector<8x512xf32> -> vector<8x512xf32>
    %83 = arith.index_cast %c2_i32 : i32 to index
    %c0_30 = arith.constant 0 : index
    %c0_31 = arith.constant 0 : index
    %84 = vector.load %arg6[%83, %c0_30, %c0_31] : memref<8x8x512xf32, #tpu.memory_space<vmem>>, vector<1x8x512xf32>
    %85 = vector.shape_cast %84 : vector<1x8x512xf32> to vector<8x512xf32>
    %86 = arith.addf %82, %85 : vector<8x512xf32>
    %87 = vector.extract_strided_slice %86 {offsets = [0, 0], sizes = [8, 128], strides = [1, 1]} : vector<8x512xf32> to vector<8x128xf32>
    %88 = arith.negf %87 : vector<8x128xf32>
    %89 = math.exp %88 : vector<8x128xf32>
    %cst_32 = arith.constant 1.000000e+00 : f32
    %90 = vector.broadcast %cst_32 : f32 to vector<8x128xf32>
    %91 = arith.addf %90, %89 : vector<8x128xf32>
    %92 = arith.divf %90, %91 : vector<8x128xf32>
    %93 = vector.extract_strided_slice %86 {offsets = [0, 128], sizes = [8, 128], strides = [1, 1]} : vector<8x512xf32> to vector<8x128xf32>
    %94 = arith.negf %93 : vector<8x128xf32>
    %95 = math.exp %94 : vector<8x128xf32>
    %cst_33 = arith.constant 1.000000e+00 : f32
    %96 = vector.broadcast %cst_33 : f32 to vector<8x128xf32>
    %97 = arith.addf %96, %95 : vector<8x128xf32>
    %98 = arith.divf %96, %97 : vector<8x128xf32>
    %99 = vector.extract_strided_slice %86 {offsets = [0, 256], sizes = [8, 128], strides = [1, 1]} : vector<8x512xf32> to vector<8x128xf32>
    %100 = math.tanh %99 : vector<8x128xf32>
    %101 = vector.extract_strided_slice %86 {offsets = [0, 384], sizes = [8, 128], strides = [1, 1]} : vector<8x512xf32> to vector<8x128xf32>
    %102 = arith.negf %101 : vector<8x128xf32>
    %103 = math.exp %102 : vector<8x128xf32>
    %cst_34 = arith.constant 1.000000e+00 : f32
    %104 = vector.broadcast %cst_34 : f32 to vector<8x128xf32>
    %105 = arith.addf %104, %103 : vector<8x128xf32>
    %106 = arith.divf %104, %105 : vector<8x128xf32>
    %107 = arith.mulf %98, %74 : vector<8x128xf32>
    %108 = arith.mulf %92, %100 : vector<8x128xf32>
    %109 = arith.addf %107, %108 : vector<8x128xf32>
    %110 = math.tanh %109 : vector<8x128xf32>
    %111 = arith.mulf %106, %110 : vector<8x128xf32>
    %112 = arith.truncf %111 : vector<8x128xf32> to vector<8x128xbf16>
    %113 = arith.index_cast %c2_i32 : i32 to index
    %c0_35 = arith.constant 0 : index
    %c0_36 = arith.constant 0 : index
    %114 = vector.load %arg5[%113, %c0_35, %c0_36] : memref<8x8x128xbf16, #tpu.memory_space<vmem>>, vector<1x8x128xbf16>
    %115 = vector.shape_cast %114 : vector<1x8x128xbf16> to vector<8x128xbf16>
    %116 = vector.shape_cast %112 : vector<8x128xbf16> to vector<1x8x128xbf16>
    tpu.vector_store %arg5[%113, %c0_35, %c0_36], %116 {strides = array<i32>} : memref<8x8x128xbf16, #tpu.memory_space<vmem>>, vector<1x8x128xbf16>,
    %c3_i32 = arith.constant 3 : i32
    %cst_37 = arith.constant dense<0.000000e+00> : vector<8x512xf32>
    %117 = tpu.matmul %112, %9, %cst_37 {dimension_numbers = #tpu.dot_dimension_numbers<[1], [0], [0], [1], [0, 0, 1, 1], [], []>} : vector<8x128xbf16>, vector<128x512xbf16>, vector<8x512xf32> -> vector<8x512xf32>
    %118 = arith.index_cast %c3_i32 : i32 to index
    %c0_38 = arith.constant 0 : index
    %c0_39 = arith.constant 0 : index
    %119 = vector.load %arg6[%118, %c0_38, %c0_39] : memref<8x8x512xf32, #tpu.memory_space<vmem>>, vector<1x8x512xf32>
    %120 = vector.shape_cast %119 : vector<1x8x512xf32> to vector<8x512xf32>
    %121 = arith.addf %117, %120 : vector<8x512xf32>
    %122 = vector.extract_strided_slice %121 {offsets = [0, 0], sizes = [8, 128], strides = [1, 1]} : vector<8x512xf32> to vector<8x128xf32>
    %123 = arith.negf %122 : vector<8x128xf32>
    %124 = math.exp %123 : vector<8x128xf32>
    %cst_40 = arith.constant 1.000000e+00 : f32
    %125 = vector.broadcast %cst_40 : f32 to vector<8x128xf32>
    %126 = arith.addf %125, %124 : vector<8x128xf32>
    %127 = arith.divf %125, %126 : vector<8x128xf32>
    %128 = vector.extract_strided_slice %121 {offsets = [0, 128], sizes = [8, 128], strides = [1, 1]} : vector<8x512xf32> to vector<8x128xf32>
    %129 = arith.negf %128 : vector<8x128xf32>
    %130 = math.exp %129 : vector<8x128xf32>
    %cst_41 = arith.constant 1.000000e+00 : f32
    %131 = vector.broadcast %cst_41 : f32 to vector<8x128xf32>
    %132 = arith.addf %131, %130 : vector<8x128xf32>
    %133 = arith.divf %131, %132 : vector<8x128xf32>
    %134 = vector.extract_strided_slice %121 {offsets = [0, 256], sizes = [8, 128], strides = [1, 1]} : vector<8x512xf32> to vector<8x128xf32>
    %135 = math.tanh %134 : vector<8x128xf32>
    %136 = vector.extract_strided_slice %121 {offsets = [0, 384], sizes = [8, 128], strides = [1, 1]} : vector<8x512xf32> to vector<8x128xf32>
    %137 = arith.negf %136 : vector<8x128xf32>
    %138 = math.exp %137 : vector<8x128xf32>
    %cst_42 = arith.constant 1.000000e+00 : f32
    %139 = vector.broadcast %cst_42 : f32 to vector<8x128xf32>
    %140 = arith.addf %139, %138 : vector<8x128xf32>
    %141 = arith.divf %139, %140 : vector<8x128xf32>
    %142 = arith.mulf %133, %109 : vector<8x128xf32>
    %143 = arith.mulf %127, %135 : vector<8x128xf32>
    %144 = arith.addf %142, %143 : vector<8x128xf32>
    %145 = math.tanh %144 : vector<8x128xf32>
    %146 = arith.mulf %141, %145 : vector<8x128xf32>
    %147 = arith.truncf %146 : vector<8x128xf32> to vector<8x128xbf16>
    %148 = arith.index_cast %c3_i32 : i32 to index
    %c0_43 = arith.constant 0 : index
    %c0_44 = arith.constant 0 : index
    %149 = vector.load %arg5[%148, %c0_43, %c0_44] : memref<8x8x128xbf16, #tpu.memory_space<vmem>>, vector<1x8x128xbf16>
    %150 = vector.shape_cast %149 : vector<1x8x128xbf16> to vector<8x128xbf16>
    %151 = vector.shape_cast %147 : vector<8x128xbf16> to vector<1x8x128xbf16>
    tpu.vector_store %arg5[%148, %c0_43, %c0_44], %151 {strides = array<i32>} : memref<8x8x128xbf16, #tpu.memory_space<vmem>>, vector<1x8x128xbf16>,
    %c4_i32 = arith.constant 4 : i32
    %cst_45 = arith.constant dense<0.000000e+00> : vector<8x512xf32>
    %152 = tpu.matmul %147, %9, %cst_45 {dimension_numbers = #tpu.dot_dimension_numbers<[1], [0], [0], [1], [0, 0, 1, 1], [], []>} : vector<8x128xbf16>, vector<128x512xbf16>, vector<8x512xf32> -> vector<8x512xf32>
    %153 = arith.index_cast %c4_i32 : i32 to index
    %c0_46 = arith.constant 0 : index
    %c0_47 = arith.constant 0 : index
    %154 = vector.load %arg6[%153, %c0_46, %c0_47] : memref<8x8x512xf32, #tpu.memory_space<vmem>>, vector<1x8x512xf32>
    %155 = vector.shape_cast %154 : vector<1x8x512xf32> to vector<8x512xf32>
    %156 = arith.addf %152, %155 : vector<8x512xf32>
    %157 = vector.extract_strided_slice %156 {offsets = [0, 0], sizes = [8, 128], strides = [1, 1]} : vector<8x512xf32> to vector<8x128xf32>
    %158 = arith.negf %157 : vector<8x128xf32>
    %159 = math.exp %158 : vector<8x128xf32>
    %cst_48 = arith.constant 1.000000e+00 : f32
    %160 = vector.broadcast %cst_48 : f32 to vector<8x128xf32>
    %161 = arith.addf %160, %159 : vector<8x128xf32>
    %162 = arith.divf %160, %161 : vector<8x128xf32>
    %163 = vector.extract_strided_slice %156 {offsets = [0, 128], sizes = [8, 128], strides = [1, 1]} : vector<8x512xf32> to vector<8x128xf32>
    %164 = arith.negf %163 : vector<8x128xf32>
    %165 = math.exp %164 : vector<8x128xf32>
    %cst_49 = arith.constant 1.000000e+00 : f32
    %166 = vector.broadcast %cst_49 : f32 to vector<8x128xf32>
    %167 = arith.addf %166, %165 : vector<8x128xf32>
    %168 = arith.divf %166, %167 : vector<8x128xf32>
    %169 = vector.extract_strided_slice %156 {offsets = [0, 256], sizes = [8, 128], strides = [1, 1]} : vector<8x512xf32> to vector<8x128xf32>
    %170 = math.tanh %169 : vector<8x128xf32>
    %171 = vector.extract_strided_slice %156 {offsets = [0, 384], sizes = [8, 128], strides = [1, 1]} : vector<8x512xf32> to vector<8x128xf32>
    %172 = arith.negf %171 : vector<8x128xf32>
    %173 = math.exp %172 : vector<8x128xf32>
    %cst_50 = arith.constant 1.000000e+00 : f32
    %174 = vector.broadcast %cst_50 : f32 to vector<8x128xf32>
    %175 = arith.addf %174, %173 : vector<8x128xf32>
    %176 = arith.divf %174, %175 : vector<8x128xf32>
    %177 = arith.mulf %168, %144 : vector<8x128xf32>
    %178 = arith.mulf %162, %170 : vector<8x128xf32>
    %179 = arith.addf %177, %178 : vector<8x128xf32>
    %180 = math.tanh %179 : vector<8x128xf32>
    %181 = arith.mulf %176, %180 : vector<8x128xf32>
    %182 = arith.truncf %181 : vector<8x128xf32> to vector<8x128xbf16>
    %183 = arith.index_cast %c4_i32 : i32 to index
    %c0_51 = arith.constant 0 : index
    %c0_52 = arith.constant 0 : index
    %184 = vector.load %arg5[%183, %c0_51, %c0_52] : memref<8x8x128xbf16, #tpu.memory_space<vmem>>, vector<1x8x128xbf16>
    %185 = vector.shape_cast %184 : vector<1x8x128xbf16> to vector<8x128xbf16>
    %186 = vector.shape_cast %182 : vector<8x128xbf16> to vector<1x8x128xbf16>
    tpu.vector_store %arg5[%183, %c0_51, %c0_52], %186 {strides = array<i32>} : memref<8x8x128xbf16, #tpu.memory_space<vmem>>, vector<1x8x128xbf16>,
    %c5_i32 = arith.constant 5 : i32
    %cst_53 = arith.constant dense<0.000000e+00> : vector<8x512xf32>
    %187 = tpu.matmul %182, %9, %cst_53 {dimension_numbers = #tpu.dot_dimension_numbers<[1], [0], [0], [1], [0, 0, 1, 1], [], []>} : vector<8x128xbf16>, vector<128x512xbf16>, vector<8x512xf32> -> vector<8x512xf32>
    %188 = arith.index_cast %c5_i32 : i32 to index
    %c0_54 = arith.constant 0 : index
    %c0_55 = arith.constant 0 : index
    %189 = vector.load %arg6[%188, %c0_54, %c0_55] : memref<8x8x512xf32, #tpu.memory_space<vmem>>, vector<1x8x512xf32>
    %190 = vector.shape_cast %189 : vector<1x8x512xf32> to vector<8x512xf32>
    %191 = arith.addf %187, %190 : vector<8x512xf32>
    %192 = vector.extract_strided_slice %191 {offsets = [0, 0], sizes = [8, 128], strides = [1, 1]} : vector<8x512xf32> to vector<8x128xf32>
    %193 = arith.negf %192 : vector<8x128xf32>
    %194 = math.exp %193 : vector<8x128xf32>
    %cst_56 = arith.constant 1.000000e+00 : f32
    %195 = vector.broadcast %cst_56 : f32 to vector<8x128xf32>
    %196 = arith.addf %195, %194 : vector<8x128xf32>
    %197 = arith.divf %195, %196 : vector<8x128xf32>
    %198 = vector.extract_strided_slice %191 {offsets = [0, 128], sizes = [8, 128], strides = [1, 1]} : vector<8x512xf32> to vector<8x128xf32>
    %199 = arith.negf %198 : vector<8x128xf32>
    %200 = math.exp %199 : vector<8x128xf32>
    %cst_57 = arith.constant 1.000000e+00 : f32
    %201 = vector.broadcast %cst_57 : f32 to vector<8x128xf32>
    %202 = arith.addf %201, %200 : vector<8x128xf32>
    %203 = arith.divf %201, %202 : vector<8x128xf32>
    %204 = vector.extract_strided_slice %191 {offsets = [0, 256], sizes = [8, 128], strides = [1, 1]} : vector<8x512xf32> to vector<8x128xf32>
    %205 = math.tanh %204 : vector<8x128xf32>
    %206 = vector.extract_strided_slice %191 {offsets = [0, 384], sizes = [8, 128], strides = [1, 1]} : vector<8x512xf32> to vector<8x128xf32>
    %207 = arith.negf %206 : vector<8x128xf32>
    %208 = math.exp %207 : vector<8x128xf32>
    %cst_58 = arith.constant 1.000000e+00 : f32
    %209 = vector.broadcast %cst_58 : f32 to vector<8x128xf32>
    %210 = arith.addf %209, %208 : vector<8x128xf32>
    %211 = arith.divf %209, %210 : vector<8x128xf32>
    %212 = arith.mulf %203, %179 : vector<8x128xf32>
    %213 = arith.mulf %197, %205 : vector<8x128xf32>
    %214 = arith.addf %212, %213 : vector<8x128xf32>
    %215 = math.tanh %214 : vector<8x128xf32>
    %216 = arith.mulf %211, %215 : vector<8x128xf32>
    %217 = arith.truncf %216 : vector<8x128xf32> to vector<8x128xbf16>
    %218 = arith.index_cast %c5_i32 : i32 to index
    %c0_59 = arith.constant 0 : index
    %c0_60 = arith.constant 0 : index
    %219 = vector.load %arg5[%218, %c0_59, %c0_60] : memref<8x8x128xbf16, #tpu.memory_space<vmem>>, vector<1x8x128xbf16>
    %220 = vector.shape_cast %219 : vector<1x8x128xbf16> to vector<8x128xbf16>
    %221 = vector.shape_cast %217 : vector<8x128xbf16> to vector<1x8x128xbf16>
    tpu.vector_store %arg5[%218, %c0_59, %c0_60], %221 {strides = array<i32>} : memref<8x8x128xbf16, #tpu.memory_space<vmem>>, vector<1x8x128xbf16>,
    %c6_i32 = arith.constant 6 : i32
    %cst_61 = arith.constant dense<0.000000e+00> : vector<8x512xf32>
    %222 = tpu.matmul %217, %9, %cst_61 {dimension_numbers = #tpu.dot_dimension_numbers<[1], [0], [0], [1], [0, 0, 1, 1], [], []>} : vector<8x128xbf16>, vector<128x512xbf16>, vector<8x512xf32> -> vector<8x512xf32>
    %223 = arith.index_cast %c6_i32 : i32 to index
    %c0_62 = arith.constant 0 : index
    %c0_63 = arith.constant 0 : index
    %224 = vector.load %arg6[%223, %c0_62, %c0_63] : memref<8x8x512xf32, #tpu.memory_space<vmem>>, vector<1x8x512xf32>
    %225 = vector.shape_cast %224 : vector<1x8x512xf32> to vector<8x512xf32>
    %226 = arith.addf %222, %225 : vector<8x512xf32>
    %227 = vector.extract_strided_slice %226 {offsets = [0, 0], sizes = [8, 128], strides = [1, 1]} : vector<8x512xf32> to vector<8x128xf32>
    %228 = arith.negf %227 : vector<8x128xf32>
    %229 = math.exp %228 : vector<8x128xf32>
    %cst_64 = arith.constant 1.000000e+00 : f32
    %230 = vector.broadcast %cst_64 : f32 to vector<8x128xf32>
    %231 = arith.addf %230, %229 : vector<8x128xf32>
    %232 = arith.divf %230, %231 : vector<8x128xf32>
    %233 = vector.extract_strided_slice %226 {offsets = [0, 128], sizes = [8, 128], strides = [1, 1]} : vector<8x512xf32> to vector<8x128xf32>
    %234 = arith.negf %233 : vector<8x128xf32>
    %235 = math.exp %234 : vector<8x128xf32>
    %cst_65 = arith.constant 1.000000e+00 : f32
    %236 = vector.broadcast %cst_65 : f32 to vector<8x128xf32>
    %237 = arith.addf %236, %235 : vector<8x128xf32>
    %238 = arith.divf %236, %237 : vector<8x128xf32>
    %239 = vector.extract_strided_slice %226 {offsets = [0, 256], sizes = [8, 128], strides = [1, 1]} : vector<8x512xf32> to vector<8x128xf32>
    %240 = math.tanh %239 : vector<8x128xf32>
    %241 = vector.extract_strided_slice %226 {offsets = [0, 384], sizes = [8, 128], strides = [1, 1]} : vector<8x512xf32> to vector<8x128xf32>
    %242 = arith.negf %241 : vector<8x128xf32>
    %243 = math.exp %242 : vector<8x128xf32>
    %cst_66 = arith.constant 1.000000e+00 : f32
    %244 = vector.broadcast %cst_66 : f32 to vector<8x128xf32>
    %245 = arith.addf %244, %243 : vector<8x128xf32>
    %246 = arith.divf %244, %245 : vector<8x128xf32>
    %247 = arith.mulf %238, %214 : vector<8x128xf32>
    %248 = arith.mulf %232, %240 : vector<8x128xf32>
    %249 = arith.addf %247, %248 : vector<8x128xf32>
    %250 = math.tanh %249 : vector<8x128xf32>
    %251 = arith.mulf %246, %250 : vector<8x128xf32>
    %252 = arith.truncf %251 : vector<8x128xf32> to vector<8x128xbf16>
    %253 = arith.index_cast %c6_i32 : i32 to index
    %c0_67 = arith.constant 0 : index
    %c0_68 = arith.constant 0 : index
    %254 = vector.load %arg5[%253, %c0_67, %c0_68] : memref<8x8x128xbf16, #tpu.memory_space<vmem>>, vector<1x8x128xbf16>
    %255 = vector.shape_cast %254 : vector<1x8x128xbf16> to vector<8x128xbf16>
    %256 = vector.shape_cast %252 : vector<8x128xbf16> to vector<1x8x128xbf16>
    tpu.vector_store %arg5[%253, %c0_67, %c0_68], %256 {strides = array<i32>} : memref<8x8x128xbf16, #tpu.memory_space<vmem>>, vector<1x8x128xbf16>,
    %c7_i32 = arith.constant 7 : i32
    %cst_69 = arith.constant dense<0.000000e+00> : vector<8x512xf32>
    %257 = tpu.matmul %252, %9, %cst_69 {dimension_numbers = #tpu.dot_dimension_numbers<[1], [0], [0], [1], [0, 0, 1, 1], [], []>} : vector<8x128xbf16>, vector<128x512xbf16>, vector<8x512xf32> -> vector<8x512xf32>
    %258 = arith.index_cast %c7_i32 : i32 to index
    %c0_70 = arith.constant 0 : index
    %c0_71 = arith.constant 0 : index
    %259 = vector.load %arg6[%258, %c0_70, %c0_71] : memref<8x8x512xf32, #tpu.memory_space<vmem>>, vector<1x8x512xf32>
    %260 = vector.shape_cast %259 : vector<1x8x512xf32> to vector<8x512xf32>
    %261 = arith.addf %257, %260 : vector<8x512xf32>
    %262 = vector.extract_strided_slice %261 {offsets = [0, 0], sizes = [8, 128], strides = [1, 1]} : vector<8x512xf32> to vector<8x128xf32>
    %263 = arith.negf %262 : vector<8x128xf32>
    %264 = math.exp %263 : vector<8x128xf32>
    %cst_72 = arith.constant 1.000000e+00 : f32
    %265 = vector.broadcast %cst_72 : f32 to vector<8x128xf32>
    %266 = arith.addf %265, %264 : vector<8x128xf32>
    %267 = arith.divf %265, %266 : vector<8x128xf32>
    %268 = vector.extract_strided_slice %261 {offsets = [0, 128], sizes = [8, 128], strides = [1, 1]} : vector<8x512xf32> to vector<8x128xf32>
    %269 = arith.negf %268 : vector<8x128xf32>
    %270 = math.exp %269 : vector<8x128xf32>
    %cst_73 = arith.constant 1.000000e+00 : f32
    %271 = vector.broadcast %cst_73 : f32 to vector<8x128xf32>
    %272 = arith.addf %271, %270 : vector<8x128xf32>
    %273 = arith.divf %271, %272 : vector<8x128xf32>
    %274 = vector.extract_strided_slice %261 {offsets = [0, 256], sizes = [8, 128], strides = [1, 1]} : vector<8x512xf32> to vector<8x128xf32>
    %275 = math.tanh %274 : vector<8x128xf32>
    %276 = vector.extract_strided_slice %261 {offsets = [0, 384], sizes = [8, 128], strides = [1, 1]} : vector<8x512xf32> to vector<8x128xf32>
    %277 = arith.negf %276 : vector<8x128xf32>
    %278 = math.exp %277 : vector<8x128xf32>
    %cst_74 = arith.constant 1.000000e+00 : f32
    %279 = vector.broadcast %cst_74 : f32 to vector<8x128xf32>
    %280 = arith.addf %279, %278 : vector<8x128xf32>
    %281 = arith.divf %279, %280 : vector<8x128xf32>
    %282 = arith.mulf %273, %249 : vector<8x128xf32>
    %283 = arith.mulf %267, %275 : vector<8x128xf32>
    %284 = arith.addf %282, %283 : vector<8x128xf32>
    %285 = math.tanh %284 : vector<8x128xf32>
    %286 = arith.mulf %281, %285 : vector<8x128xf32>
    %287 = arith.truncf %286 : vector<8x128xf32> to vector<8x128xbf16>
    %288 = arith.index_cast %c7_i32 : i32 to index
    %c0_75 = arith.constant 0 : index
    %c0_76 = arith.constant 0 : index
    %289 = vector.load %arg5[%288, %c0_75, %c0_76] : memref<8x8x128xbf16, #tpu.memory_space<vmem>>, vector<1x8x128xbf16>
    %290 = vector.shape_cast %289 : vector<1x8x128xbf16> to vector<8x128xbf16>
    %291 = vector.shape_cast %287 : vector<8x128xbf16> to vector<1x8x128xbf16>
    tpu.vector_store %arg5[%288, %c0_75, %c0_76], %291 {strides = array<i32>} : memref<8x8x128xbf16, #tpu.memory_space<vmem>>, vector<1x8x128xbf16>,
    %c8_i32 = arith.constant 8 : i32
    return
  }
  func.func @transform_0(%arg0: i32) -> (i32, i32, i32) {
    %c0_i32 = arith.constant 0 : i32
    %c0_i32_0 = arith.constant 0 : i32
    %c0_i32_1 = arith.constant 0 : i32
    return %c0_i32, %arg0, %c0_i32_0 : i32, i32, i32
  }
  func.func @transform_1(%arg0: i32) -> (i32, i32) {
    %c0_i32 = arith.constant 0 : i32
    %c0_i32_0 = arith.constant 0 : i32
    %c0_i32_1 = arith.constant 0 : i32
    return %c0_i32, %c0_i32_0 : i32, i32
  }
  func.func @transform_2(%arg0: i32) -> (i32, i32) {
    %c0_i32 = arith.constant 0 : i32
    %c0_i32_0 = arith.constant 0 : i32
    %c0_i32_1 = arith.constant 0 : i32
    return %c0_i32, %c0_i32_0 : i32, i32
  }
  func.func @transform_3(%arg0: i32) -> (i32, i32) {
    %c0_i32 = arith.constant 0 : i32
    %c0_i32_0 = arith.constant 0 : i32
    %c0_i32_1 = arith.constant 0 : i32
    return %c0_i32, %c0_i32_0 : i32, i32
  }
  func.func @transform_4(%arg0: i32) -> (i32, i32, i32) {
    %c0_i32 = arith.constant 0 : i32
    %c0_i32_0 = arith.constant 0 : i32
    %c0_i32_1 = arith.constant 0 : i32
    return %c0_i32, %arg0, %c0_i32_0 : i32, i32, i32
  }
}

</mosaic_0001>

<llo_original>
// kernel: decoder_rnn_forward.3
$region0: #{decoder_rnn_forward.3}
  #allocation0 [shape = 'u32[]', space=smem, size = 0x4, offset = 0x4, fixed_abs, tag = 'smem constant byte address 0x4 - core index']
  #allocation1 [shape = 'u32[144,128]{1,0:T(1,128)}', space=vmem, size = 0x12000, scoped, tag = 'internal scratch']
  %s0 = inlined_call_operand.vmem [shape: bf16[64,128], index: 0, kind: input, shape index: {}]
  %s1 = inlined_call_operand.vmem [shape: bf16[128,128], index: 1, kind: input, shape index: {}]
  %s2 = inlined_call_operand.vmem [shape: f32[1,128], index: 2, kind: input, shape index: {}]
  %s3 = inlined_call_operand.vmem [shape: f32[64,128], index: 3, kind: output, shape index: {}]
  %s4 = sld [smem:[#allocation0]]
  $region22: #{decoder_rnn_forward.3} parent=0
    _
  %s6 = ssub.s32 1, %s4
  %s7 = scalar_select 0, %s6, %s4
  // Predicated region
  $region2: #{decoder_rnn_forward.3} parent=0 // pred_check
    _
  $region3: #{decoder_rnn_forward.3} parent=0 // pred_check_branch
    %9 = sbr.rel (0) target = $region5
  $region4: #{decoder_rnn_forward.3} parent=0 // pred_region
    _
  $region5: #{decoder_rnn_forward.3} parent=0 // pred_fallthru
    _
  // Predicated region
  $region6: #{decoder_rnn_forward.3} parent=0 // pred_check
    _
  $region7: #{decoder_rnn_forward.3} parent=0 // pred_check_branch
    %11 = sbr.rel (0) target = $region9
  $region8: #{decoder_rnn_forward.3} parent=0 // pred_region
    _
  $region9: #{decoder_rnn_forward.3} parent=0 // pred_fallthru
    _
  // Predicated region
  $region10: #{decoder_rnn_forward.3} parent=0 // pred_check
    _
  $region11: #{decoder_rnn_forward.3} parent=0 // pred_check_branch
    %13 = sbr.rel (0) target = $region13
  $region12: #{decoder_rnn_forward.3} parent=0 // pred_region
    _
  $region13: #{decoder_rnn_forward.3} parent=0 // pred_fallthru
    _
  %v15 = vld [vmem:[%s0] sm:$0xf]
  %v16 = vld [vmem:[%s0 + $0x4] sm:$0xf]
  %v17 = vld [vmem:[%s0 + $0x8] sm:$0xf]
  %v18 = vld [vmem:[%s0 + $0xc] sm:$0xf]
  %v19 = vld [vmem:[%s0 + $0x10] sm:$0xf]
  %v20 = vld [vmem:[%s0 + $0x14] sm:$0xf]
  %v21 = vld [vmem:[%s0 + $0x18] sm:$0xf]
  %v22 = vld [vmem:[%s0 + $0x1c] sm:$0xf]
  %v23 = vld [vmem:[%s1] sm:$0xf]
  %v24 = vld [vmem:[%s1 + $0x4] sm:$0xf]
  %v25 = vld [vmem:[%s1 + $0x8] sm:$0xf]
  %v26 = vld [vmem:[%s1 + $0xc] sm:$0xf]
  %v27 = vld [vmem:[%s1 + $0x10] sm:$0xf]
  %v28 = vld [vmem:[%s1 + $0x14] sm:$0xf]
  %v29 = vld [vmem:[%s1 + $0x18] sm:$0xf]
  %v30 = vld [vmem:[%s1 + $0x1c] sm:$0xf]
  %v31 = vld [vmem:[%s1 + $0x20] sm:$0xf]
  %v32 = vld [vmem:[%s1 + $0x24] sm:$0xf]
  %v33 = vld [vmem:[%s1 + $0x28] sm:$0xf]
  %v34 = vld [vmem:[%s1 + $0x2c] sm:$0xf]
  %v35 = vld [vmem:[%s1 + $0x30] sm:$0xf]
  %v36 = vld [vmem:[%s1 + $0x34] sm:$0xf]
  %v37 = vld [vmem:[%s1 + $0x38] sm:$0xf]
  %v38 = vld [vmem:[%s1 + $0x3c] sm:$0xf]
  %v39 = vld [vmem:[%s2] sm:$0x1]
  %v41 = vlaneseq
  %v42 = vshrl.u32 %v41, 7
  %v43 = vsub.s32 0, %v42
  %v44 = vrot.slane %v39, %v43
  %v54 = vunpack.c.l.b16 %v15
  %v55 = vunpack.c.l.b16 %v16
  %v56 = vunpack.c.l.b16 %v17
  %v57 = vunpack.c.l.b16 %v18
  %v58 = vunpack.c.l.b16 %v19
  %v59 = vunpack.c.l.b16 %v20
  %v60 = vunpack.c.l.b16 %v21
  %v61 = vunpack.c.l.b16 %v22
  %v62 = vpack.c.b16 %v55, %v54
  %v63 = vpack.c.b16 %v57, %v56
  %v64 = vpack.c.b16 %v59, %v58
  %v65 = vpack.c.b16 %v61, %v60
  %v86 = vunpack.c.l.b16 %v23
  %v87 = vunpack.c.l.b16 %v24
  %v88 = vunpack.c.l.b16 %v25
  %v89 = vunpack.c.l.b16 %v26
  %v90 = vunpack.c.l.b16 %v27
  %v91 = vunpack.c.l.b16 %v28
  %v92 = vunpack.c.l.b16 %v29
  %v93 = vunpack.c.l.b16 %v30
  %v94 = vunpack.c.l.b16 %v31
  %v95 = vunpack.c.l.b16 %v32
  %v96 = vunpack.c.l.b16 %v33
  %v97 = vunpack.c.l.b16 %v34
  %v98 = vunpack.c.l.b16 %v35
  %v99 = vunpack.c.l.b16 %v36
  %v100 = vunpack.c.l.b16 %v37
  %v101 = vunpack.c.l.b16 %v38
  %v102 = vpack.c.b16 %v87, %v86
  %v103 = vpack.c.b16 %v89, %v88
  %v104 = vpack.c.b16 %v91, %v90
  %v105 = vpack.c.b16 %v93, %v92
  %v106 = vpack.c.b16 %v95, %v94
  %v107 = vpack.c.b16 %v97, %v96
  %v108 = vpack.c.b16 %v99, %v98
  %v109 = vpack.c.b16 %v101, %v100
  %118 = vmatprep.subr.bf16.mxu0 0
  %119 = vmatpush1.bf16.msra.mxu0 %v102
  %120 = vmatprep.subr.bf16.mxu0 0
  %121 = vmatpush1.bf16.msra.mxu0 %v103
  %122 = vmatprep.subr.bf16.mxu0 0
  %123 = vmatpush1.bf16.msra.mxu0 %v104
  %124 = vmatprep.subr.bf16.mxu0 0
  %125 = vmatpush1.bf16.msra.mxu0 %v105
  %126 = vmatprep.subr.bf16.mxu0 0
  %127 = vmatpush1.bf16.msra.mxu0 %v106
  %128 = vmatprep.subr.bf16.mxu0 0
  %129 = vmatpush1.bf16.msra.mxu0 %v107
  %130 = vmatprep.subr.bf16.mxu0 0
  %131 = vmatpush1.bf16.msra.mxu0 %v108
  %132 = vmatprep.subr.bf16.mxu0 0
  %133 = vmatpush1.bf16.msra.mxu0 %v109
  %134 = vmatprep.subr.bf16.mxu0 0
  %135 = vmatpush1.bf16.msra.mxu0 0
  %136 = vmatprep.subr.bf16.mxu0 0
  %137 = vmatpush1.bf16.msra.mxu0 0
  %138 = vmatprep.subr.bf16.mxu0 0
  %139 = vmatpush1.bf16.msra.mxu0 0
  %140 = vmatprep.subr.bf16.mxu0 0
  %141 = vmatpush1.bf16.msra.mxu0 0
  %142 = vmatprep.subr.bf16.mxu0 0
  %143 = vmatpush1.bf16.msra.mxu0 0
  %144 = vmatprep.subr.bf16.mxu0 0
  %145 = vmatpush1.bf16.msra.mxu0 0
  %146 = vmatprep.subr.bf16.mxu0 0
  %147 = vmatpush1.bf16.msra.mxu0 0
  %148 = vmatprep.subr.bf16.mxu0 0
  %149 = vmatpush1.bf16.msra.mxu0 0
  %150 = vmatprep.mubr.bf16.mxu0 0
  %151 = vmatmul.mubr.bf16.gmra.mrb[0].mxu0 %v62
  %v152 = vpop.f32.mrb[0].mxu0
  %v153 = vadd.f32 %v44, %v152
  %v154 = vpop.f32.mrb[0].mxu0
  %v155 = vpop.f32.mrb[0].mxu0
  %v156 = vadd.f32 %v44, %v155
  %v157 = vpop.f32.mrb[0].mxu0
  %158 = vmatprep.mubr.bf16.mxu0 0
  %159 = vmatmul.mubr.bf16.gmra.mrb[0].mxu0 %v63
  %v160 = vpop.f32.mrb[0].mxu0
  %v161 = vadd.f32 %v44, %v160
  %v162 = vpop.f32.mrb[0].mxu0
  %v163 = vpop.f32.mrb[0].mxu0
  %v164 = vadd.f32 %v44, %v163
  %v165 = vpop.f32.mrb[0].mxu0
  %166 = vmatprep.mubr.bf16.mxu0 0
  %167 = vmatmul.mubr.bf16.gmra.mrb[0].mxu0 %v64
  %v168 = vpop.f32.mrb[0].mxu0
  %v169 = vadd.f32 %v44, %v168
  %v170 = vpop.f32.mrb[0].mxu0
  %v171 = vpop.f32.mrb[0].mxu0
  %v172 = vadd.f32 %v44, %v171
  %v173 = vpop.f32.mrb[0].mxu0
  %174 = vmatprep.mubr.bf16.mxu0 0
  %175 = vmatmul.mubr.bf16.gmra.mrb[0].mxu0 %v65
  %v176 = vpop.f32.mrb[0].mxu0
  %v177 = vadd.f32 %v44, %v176
  %v178 = vpop.f32.mrb[0].mxu0
  %v179 = vpop.f32.mrb[0].mxu0
  %v180 = vadd.f32 %v44, %v179
  %v181 = vpop.f32.mrb[0].mxu0
  %182 = vdwg.mxu0
  %183 = vst [vmem:[%s3] sm:$0xff] %v153
  %184 = vst [vmem:[%s3 + $0x8] sm:$0xff] %v156
  %185 = vst [vmem:[%s3 + $0x10] sm:$0xff] %v161
  %186 = vst [vmem:[%s3 + $0x18] sm:$0xff] %v164
  %187 = vst [vmem:[%s3 + $0x20] sm:$0xff] %v169
  %188 = vst [vmem:[%s3 + $0x28] sm:$0xff] %v172
  %189 = vst [vmem:[%s3 + $0x30] sm:$0xff] %v177
  %190 = vst [vmem:[%s3 + $0x38] sm:$0xff] %v180
  // Predicated region
  $region14: #{decoder_rnn_forward.3} parent=0 // pred_check
    _
  $region15: #{decoder_rnn_forward.3} parent=0 // pred_check_branch
    %192 = sbr.rel (0) target = $region17
  $region16: #{decoder_rnn_forward.3} parent=0 // pred_region
    _
  $region17: #{decoder_rnn_forward.3} parent=0 // pred_fallthru
    _
  // Predicated region
  $region18: #{decoder_rnn_forward.3} parent=0 // pred_check
    _
  $region19: #{decoder_rnn_forward.3} parent=0 // pred_check_branch
    %194 = sbr.rel (0) target = $region21
  $region20: #{decoder_rnn_forward.3} parent=0 // pred_region
    _
  $region21: #{decoder_rnn_forward.3} parent=0 // pred_fallthru
    _

// kernel: decoder_rnn_forward.2
$region0: #{decoder_rnn_forward.2}
  #allocation0 [shape = 'u32[]', space=smem, size = 0x4, offset = 0x4, fixed_abs, tag = 'smem constant byte address 0x4 - core index']
  #allocation1 [shape = 'u32[144,128]{1,0:T(1,128)}', space=vmem, size = 0x12000, scoped, tag = 'internal scratch']
  #allocation2 [shape = 'f32[8,8,512]{2,1,0:T(8,128)}', space=vmem, size = 0x20000, scoped, tag = 'scratch operand']
  %s0 = inlined_call_operand.vmem [shape: bf16[8,8,128], index: 0, kind: input, shape index: {}]
  %s1 = inlined_call_operand.vmem [shape: bf16[128,512], index: 1, kind: input, shape index: {}]
  %s2 = inlined_call_operand.vmem [shape: bf16[128,512], index: 2, kind: input, shape index: {}]
  %s3 = inlined_call_operand.vmem [shape: f32[1,512], index: 3, kind: input, shape index: {}]
  %s4 = inlined_call_operand.vmem [shape: bf16[8,8,128], index: 4, kind: output, shape index: {}]
  %s5 = sld [smem:[#allocation0]]
  $region26: #{decoder_rnn_forward.2} parent=0
    _
  %s7 = ssub.s32 1, %s5
  %s8 = scalar_select 0, %s7, %s5
  // Predicated region
  $region2: #{decoder_rnn_forward.2} parent=0 // pred_check
    _
  $region3: #{decoder_rnn_forward.2} parent=0 // pred_check_branch
    %10 = sbr.rel (0) target = $region5
  $region4: #{decoder_rnn_forward.2} parent=0 // pred_region
    _
  $region5: #{decoder_rnn_forward.2} parent=0 // pred_fallthru
    _
  // Predicated region
  $region6: #{decoder_rnn_forward.2} parent=0 // pred_check
    _
  $region7: #{decoder_rnn_forward.2} parent=0 // pred_check_branch
    %12 = sbr.rel (0) target = $region9
  $region8: #{decoder_rnn_forward.2} parent=0 // pred_region
    _
  $region9: #{decoder_rnn_forward.2} parent=0 // pred_fallthru
    _
  // Predicated region
  $region10: #{decoder_rnn_forward.2} parent=0 // pred_check
    _
  $region11: #{decoder_rnn_forward.2} parent=0 // pred_check_branch
    %14 = sbr.rel (0) target = $region13
  $region12: #{decoder_rnn_forward.2} parent=0 // pred_region
    _
  $region13: #{decoder_rnn_forward.2} parent=0 // pred_fallthru
    _
  // Predicated region
  $region14: #{decoder_rnn_forward.2} parent=0 // pred_check
    _
  $region15: #{decoder_rnn_forward.2} parent=0 // pred_check_branch
    %16 = sbr.rel (0) target = $region17
  $region16: #{decoder_rnn_forward.2} parent=0 // pred_region
    _
  $region17: #{decoder_rnn_forward.2} parent=0 // pred_fallthru
    _
  %v18 = vld [vmem:[%s0] sm:$0xf]
  %v19 = vld [vmem:[%s0 + $0x4] sm:$0xf]
  %v20 = vld [vmem:[%s0 + $0x8] sm:$0xf]
  %v21 = vld [vmem:[%s0 + $0xc] sm:$0xf]
  %v22 = vld [vmem:[%s0 + $0x10] sm:$0xf]
  %v23 = vld [vmem:[%s0 + $0x14] sm:$0xf]
  %v24 = vld [vmem:[%s0 + $0x18] sm:$0xf]
  %v25 = vld [vmem:[%s0 + $0x1c] sm:$0xf]
  %v26 = vld [vmem:[%s1] sm:$0xff]
  %v27 = vld [vmem:[%s1 + $0x8] sm:$0xff]
  %v28 = vld [vmem:[%s1 + $0x10] sm:$0xff]
  %v29 = vld [vmem:[%s1 + $0x18] sm:$0xff]
  %v30 = vld [vmem:[%s1 + $0x20] sm:$0xff]
  %v31 = vld [vmem:[%s1 + $0x28] sm:$0xff]
  %v32 = vld [vmem:[%s1 + $0x30] sm:$0xff]
  %v33 = vld [vmem:[%s1 + $0x38] sm:$0xff]
  %v34 = vld [vmem:[%s1 + $0x40] sm:$0xff]
  %v35 = vld [vmem:[%s1 + $0x48] sm:$0xff]
  %v36 = vld [vmem:[%s1 + $0x50] sm:$0xff]
  %v37 = vld [vmem:[%s1 + $0x58] sm:$0xff]
  %v38 = vld [vmem:[%s1 + $0x60] sm:$0xff]
  %v39 = vld [vmem:[%s1 + $0x68] sm:$0xff]
  %v40 = vld [vmem:[%s1 + $0x70] sm:$0xff]
  %v41 = vld [vmem:[%s1 + $0x78] sm:$0xff]
  %v42 = vld [vmem:[%s1 + $0x80] sm:$0xff]
  %v43 = vld [vmem:[%s1 + $0x88] sm:$0xff]
  %v44 = vld [vmem:[%s1 + $0x90] sm:$0xff]
  %v45 = vld [vmem:[%s1 + $0x98] sm:$0xff]
  %v46 = vld [vmem:[%s1 + $0xa0] sm:$0xff]
  %v47 = vld [vmem:[%s1 + $0xa8] sm:$0xff]
  %v48 = vld [vmem:[%s1 + $0xb0] sm:$0xff]
  %v49 = vld [vmem:[%s1 + $0xb8] sm:$0xff]
  %v50 = vld [vmem:[%s1 + $0xc0] sm:$0xff]
  %v51 = vld [vmem:[%s1 + $0xc8] sm:$0xff]
  %v52 = vld [vmem:[%s1 + $0xd0] sm:$0xff]
  %v53 = vld [vmem:[%s1 + $0xd8] sm:$0xff]
  %v54 = vld [vmem:[%s1 + $0xe0] sm:$0xff]
  %v55 = vld [vmem:[%s1 + $0xe8] sm:$0xff]
  %v56 = vld [vmem:[%s1 + $0xf0] sm:$0xff]
  %v57 = vld [vmem:[%s1 + $0xf8] sm:$0xff]
  %v58 = vld [vmem:[%s3] sm:$0xf]
  %v60 = vlaneseq
  %v61 = vshrl.u32 %v60, 7
  %v62 = vsub.s32 0, %v61
  %v63 = vrot.slane %v58, %v62
  %v64 = vlaneseq
  %v65 = vshrl.u32 %v64, 7
  %v66 = vsub.s32 1, %v65
  %v67 = vrot.slane %v58, %v66
  %v68 = vlaneseq
  %v69 = vshrl.u32 %v68, 7
  %v70 = vsub.s32 2, %v69
  %v71 = vrot.slane %v58, %v70
  %v72 = vlaneseq
  %v73 = vshrl.u32 %v72, 7
  %v74 = vsub.s32 3, %v73
  %v75 = vrot.slane %v58, %v74
  %v88 = vunpack.c.l.b16 %v18
  %v89 = vunpack.c.l.b16 %v19
  %v90 = vunpack.c.l.b16 %v20
  %v91 = vunpack.c.l.b16 %v21
  %v92 = vunpack.c.l.b16 %v22
  %v93 = vunpack.c.l.b16 %v23
  %v94 = vunpack.c.l.b16 %v24
  %v95 = vunpack.c.l.b16 %v25
  %v96 = vpack.c.b16 %v89, %v88
  %v97 = vpack.c.b16 %v91, %v90
  %v98 = vpack.c.b16 %v93, %v92
  %v99 = vpack.c.b16 %v95, %v94
  %v136 = vunpack.c.l.b16 %v26
  %v137 = vunpack.c.h.b16 %v26
  %v138 = vunpack.c.l.b16 %v27
  %v139 = vunpack.c.h.b16 %v27
  %v140 = vunpack.c.l.b16 %v28
  %v141 = vunpack.c.h.b16 %v28
  %v142 = vunpack.c.l.b16 %v29
  %v143 = vunpack.c.h.b16 %v29
  %v144 = vunpack.c.l.b16 %v30
  %v145 = vunpack.c.h.b16 %v30
  %v146 = vunpack.c.l.b16 %v31
  %v147 = vunpack.c.h.b16 %v31
  %v148 = vunpack.c.l.b16 %v32
  %v149 = vunpack.c.h.b16 %v32
  %v150 = vunpack.c.l.b16 %v33
  %v151 = vunpack.c.h.b16 %v33
  %v152 = vunpack.c.l.b16 %v34
  %v153 = vunpack.c.h.b16 %v34
  %v154 = vunpack.c.l.b16 %v35
  %v155 = vunpack.c.h.b16 %v35
  %v156 = vunpack.c.l.b16 %v36
  %v157 = vunpack.c.h.b16 %v36
  %v158 = vunpack.c.l.b16 %v37
  %v159 = vunpack.c.h.b16 %v37
  %v160 = vunpack.c.l.b16 %v38
  %v161 = vunpack.c.h.b16 %v38
  %v162 = vunpack.c.l.b16 %v39
  %v163 = vunpack.c.h.b16 %v39
  %v164 = vunpack.c.l.b16 %v40
  %v165 = vunpack.c.h.b16 %v40
  %v166 = vunpack.c.l.b16 %v41
  %v167 = vunpack.c.h.b16 %v41
  %v168 = vunpack.c.l.b16 %v42
  %v169 = vunpack.c.h.b16 %v42
  %v170 = vunpack.c.l.b16 %v43
  %v171 = vunpack.c.h.b16 %v43
  %v172 = vunpack.c.l.b16 %v44
  %v173 = vunpack.c.h.b16 %v44
  %v174 = vunpack.c.l.b16 %v45
  %v175 = vunpack.c.h.b16 %v45
  %v176 = vunpack.c.l.b16 %v46
  %v177 = vunpack.c.h.b16 %v46
  %v178 = vunpack.c.l.b16 %v47
  %v179 = vunpack.c.h.b16 %v47
  %v180 = vunpack.c.l.b16 %v48
  %v181 = vunpack.c.h.b16 %v48
  %v182 = vunpack.c.l.b16 %v49
  %v183 = vunpack.c.h.b16 %v49
  %v184 = vunpack.c.l.b16 %v50
  %v185 = vunpack.c.h.b16 %v50
  %v186 = vunpack.c.l.b16 %v51
  %v187 = vunpack.c.h.b16 %v51
  %v188 = vunpack.c.l.b16 %v52
  %v189 = vunpack.c.h.b16 %v52
  %v190 = vunpack.c.l.b16 %v53
  %v191 = vunpack.c.h.b16 %v53
  %v192 = vunpack.c.l.b16 %v54
  %v193 = vunpack.c.h.b16 %v54
  %v194 = vunpack.c.l.b16 %v55
  %v195 = vunpack.c.h.b16 %v55
  %v196 = vunpack.c.l.b16 %v56
  %v197 = vunpack.c.h.b16 %v56
  %v198 = vunpack.c.l.b16 %v57
  %v199 = vunpack.c.h.b16 %v57
  %v200 = vpack.c.b16 %v140, %v136
  %v201 = vpack.c.b16 %v141, %v137
  %v202 = vpack.c.b16 %v142, %v138
  %v203 = vpack.c.b16 %v143, %v139
  %v204 = vpack.c.b16 %v148, %v144
  %v205 = vpack.c.b16 %v149, %v145
  %v206 = vpack.c.b16 %v150, %v146
  %v207 = vpack.c.b16 %v151, %v147
  %v208 = vpack.c.b16 %v156, %v152
  %v209 = vpack.c.b16 %v157, %v153
  %v210 = vpack.c.b16 %v158, %v154
  %v211 = vpack.c.b16 %v159, %v155
  %v212 = vpack.c.b16 %v164, %v160
  %v213 = vpack.c.b16 %v165, %v161
  %v214 = vpack.c.b16 %v166, %v162
  %v215 = vpack.c.b16 %v167, %v163
  %v216 = vpack.c.b16 %v172, %v168
  %v217 = vpack.c.b16 %v173, %v169
  %v218 = vpack.c.b16 %v174, %v170
  %v219 = vpack.c.b16 %v175, %v171
  %v220 = vpack.c.b16 %v180, %v176
  %v221 = vpack.c.b16 %v181, %v177
  %v222 = vpack.c.b16 %v182, %v178
  %v223 = vpack.c.b16 %v183, %v179
  %v224 = vpack.c.b16 %v188, %v184
  %v225 = vpack.c.b16 %v189, %v185
  %v226 = vpack.c.b16 %v190, %v186
  %v227 = vpack.c.b16 %v191, %v187
  %v228 = vpack.c.b16 %v196, %v192
  %v229 = vpack.c.b16 %v197, %v193
  %v230 = vpack.c.b16 %v198, %v194
  %v231 = vpack.c.b16 %v199, %v195
  %264 = vmatprep.subr.bf16.mxu0 %v201
  %265 = vmatpush1.bf16.msra.mxu0 %v200
  %266 = vmatprep.subr.bf16.mxu0 %v205
  %267 = vmatpush1.bf16.msra.mxu0 %v204
  %268 = vmatprep.subr.bf16.mxu0 %v209
  %269 = vmatpush1.bf16.msra.mxu0 %v208
  %270 = vmatprep.subr.bf16.mxu0 %v213
  %271 = vmatpush1.bf16.msra.mxu0 %v212
  %272 = vmatprep.subr.bf16.mxu0 %v217
  %273 = vmatpush1.bf16.msra.mxu0 %v216
  %274 = vmatprep.subr.bf16.mxu0 %v221
  %275 = vmatpush1.bf16.msra.mxu0 %v220
  %276 = vmatprep.subr.bf16.mxu0 %v225
  %277 = vmatpush1.bf16.msra.mxu0 %v224
  %278 = vmatprep.subr.bf16.mxu0 %v229
  %279 = vmatpush1.bf16.msra.mxu0 %v228
  %280 = vmatprep.subr.bf16.mxu0 0
  %281 = vmatpush1.bf16.msra.mxu0 0
  %282 = vmatprep.subr.bf16.mxu0 0
  %283 = vmatpush1.bf16.msra.mxu0 0
  %284 = vmatprep.subr.bf16.mxu0 0
  %285 = vmatpush1.bf16.msra.mxu0 0
  %286 = vmatprep.subr.bf16.mxu0 0
  %287 = vmatpush1.bf16.msra.mxu0 0
  %288 = vmatprep.subr.bf16.mxu0 0
  %289 = vmatpush1.bf16.msra.mxu0 0
  %290 = vmatprep.subr.bf16.mxu0 0
  %291 = vmatpush1.bf16.msra.mxu0 0
  %292 = vmatprep.subr.bf16.mxu0 0
  %293 = vmatpush1.bf16.msra.mxu0 0
  %294 = vmatprep.subr.bf16.mxu0 0
  %295 = vmatpush1.bf16.msra.mxu0 0
  %296 = vmatprep.mubr.bf16.mxu0 0
  %297 = vmatmul.mubr.bf16.gmra.mrb[0].mxu0 %v96
  %v298 = vpop.f32.mrb[0].mxu0
  %v299 = vadd.f32 %v63, %v298
  %v300 = vpop.f32.mrb[0].mxu0
  %v301 = vadd.f32 %v67, %v300
  %v302 = vpop.f32.mrb[0].mxu0
  %v303 = vadd.f32 %v63, %v302
  %v304 = vpop.f32.mrb[0].mxu0
  %v305 = vadd.f32 %v67, %v304
  %306 = vmatprep.mubr.bf16.mxu0 0
  %307 = vmatmul.mubr.bf16.gmra.mrb[0].mxu0 %v97
  %v308 = vpop.f32.mrb[0].mxu0
  %v309 = vadd.f32 %v63, %v308
  %v310 = vpop.f32.mrb[0].mxu0
  %v311 = vadd.f32 %v67, %v310
  %v312 = vpop.f32.mrb[0].mxu0
  %v313 = vadd.f32 %v63, %v312
  %v314 = vpop.f32.mrb[0].mxu0
  %v315 = vadd.f32 %v67, %v314
  %316 = vmatprep.mubr.bf16.mxu0 0
  %317 = vmatmul.mubr.bf16.gmra.mrb[0].mxu0 %v98
  %v318 = vpop.f32.mrb[0].mxu0
  %v319 = vadd.f32 %v63, %v318
  %v320 = vpop.f32.mrb[0].mxu0
  %v321 = vadd.f32 %v67, %v320
  %v322 = vpop.f32.mrb[0].mxu0
  %v323 = vadd.f32 %v63, %v322
  %v324 = vpop.f32.mrb[0].mxu0
  %v325 = vadd.f32 %v67, %v324
  %326 = vmatprep.mubr.bf16.mxu0 0
  %327 = vmatmul.mubr.bf16.gmra.mrb[0].mxu0 %v99
  %v328 = vpop.f32.mrb[0].mxu0
  %v329 = vadd.f32 %v63, %v328
  %v330 = vpop.f32.mrb[0].mxu0
  %v331 = vadd.f32 %v67, %v330
  %v332 = vpop.f32.mrb[0].mxu0
  %v333 = vadd.f32 %v63, %v332
  %v334 = vpop.f32.mrb[0].mxu0
  %v335 = vadd.f32 %v67, %v334
  %336 = vdwg.mxu0
  %337 = vmatprep.subr.bf16.mxu0 %v203
  %338 = vmatpush1.bf16.msra.mxu0 %v202
  %339 = vmatprep.subr.bf16.mxu0 %v207
  %340 = vmatpush1.bf16.msra.mxu0 %v206
  %341 = vmatprep.subr.bf16.mxu0 %v211
  %342 = vmatpush1.bf16.msra.mxu0 %v210
  %343 = vmatprep.subr.bf16.mxu0 %v215
  %344 = vmatpush1.bf16.msra.mxu0 %v214
  %345 = vmatprep.subr.bf16.mxu0 %v219
  %346 = vmatpush1.bf16.msra.mxu0 %v218
  %347 = vmatprep.subr.bf16.mxu0 %v223
  %348 = vmatpush1.bf16.msra.mxu0 %v222
  %349 = vmatprep.subr.bf16.mxu0 %v227
  %350 = vmatpush1.bf16.msra.mxu0 %v226
  %351 = vmatprep.subr.bf16.mxu0 %v231
  %352 = vmatpush1.bf16.msra.mxu0 %v230
  %353 = vmatprep.subr.bf16.mxu0 0
  %354 = vmatpush1.bf16.msra.mxu0 0
  %355 = vmatprep.subr.bf16.mxu0 0
  %356 = vmatpush1.bf16.msra.mxu0 0
  %357 = vmatprep.subr.bf16.mxu0 0
  %358 = vmatpush1.bf16.msra.mxu0 0
  %359 = vmatprep.subr.bf16.mxu0 0
  %360 = vmatpush1.bf16.msra.mxu0 0
  %361 = vmatprep.subr.bf16.mxu0 0
  %362 = vmatpush1.bf16.msra.mxu0 0
  %363 = vmatprep.subr.bf16.mxu0 0
  %364 = vmatpush1.bf16.msra.mxu0 0
  %365 = vmatprep.subr.bf16.mxu0 0
  %366 = vmatpush1.bf16.msra.mxu0 0
  %367 = vmatprep.subr.bf16.mxu0 0
  %368 = vmatpush1.bf16.msra.mxu0 0
  %369 = vmatprep.mubr.bf16.mxu0 0
  %370 = vmatmul.mubr.bf16.gmra.mrb[0].mxu0 %v96
  %v371 = vpop.f32.mrb[0].mxu0
  %v372 = vadd.f32 %v71, %v371
  %v373 = vpop.f32.mrb[0].mxu0
  %v374 = vadd.f32 %v75, %v373
  %v375 = vpop.f32.mrb[0].mxu0
  %v376 = vadd.f32 %v71, %v375
  %v377 = vpop.f32.mrb[0].mxu0
  %v378 = vadd.f32 %v75, %v377
  %379 = vmatprep.mubr.bf16.mxu0 0
  %380 = vmatmul.mubr.bf16.gmra.mrb[0].mxu0 %v97
  %v381 = vpop.f32.mrb[0].mxu0
  %v382 = vadd.f32 %v71, %v381
  %v383 = vpop.f32.mrb[0].mxu0
  %v384 = vadd.f32 %v75, %v383
  %v385 = vpop.f32.mrb[0].mxu0
  %v386 = vadd.f32 %v71, %v385
  %v387 = vpop.f32.mrb[0].mxu0
  %v388 = vadd.f32 %v75, %v387
  %389 = vmatprep.mubr.bf16.mxu0 0
  %390 = vmatmul.mubr.bf16.gmra.mrb[0].mxu0 %v98
  %v391 = vpop.f32.mrb[0].mxu0
  %v392 = vadd.f32 %v71, %v391
  %v393 = vpop.f32.mrb[0].mxu0
  %v394 = vadd.f32 %v75, %v393
  %v395 = vpop.f32.mrb[0].mxu0
  %v396 = vadd.f32 %v71, %v395
  %v397 = vpop.f32.mrb[0].mxu0
  %v398 = vadd.f32 %v75, %v397
  %399 = vmatprep.mubr.bf16.mxu0 0
  %400 = vmatmul.mubr.bf16.gmra.mrb[0].mxu0 %v99
  %v401 = vpop.f32.mrb[0].mxu0
  %v402 = vadd.f32 %v71, %v401
  %v403 = vpop.f32.mrb[0].mxu0
  %v404 = vadd.f32 %v75, %v403
  %v405 = vpop.f32.mrb[0].mxu0
  %v406 = vadd.f32 %v71, %v405
  %v407 = vpop.f32.mrb[0].mxu0
  %v408 = vadd.f32 %v75, %v407
  %409 = vdwg.mxu0
  %410 = vst [vmem:[#allocation2] sm:$0xff] %v299
  %411 = vst [vmem:[#allocation2 + $0x8] sm:$0xff] %v301
  %412 = vst [vmem:[#allocation2 + $0x10] sm:$0xff] %v372
  %413 = vst [vmem:[#allocation2 + $0x18] sm:$0xff] %v374
  %414 = vst [vmem:[#allocation2 + $0x20] sm:$0xff] %v303
  %415 = vst [vmem:[#allocation2 + $0x28] sm:$0xff] %v305
  %416 = vst [vmem:[#allocation2 + $0x30] sm:$0xff] %v376
  %417 = vst [vmem:[#allocation2 + $0x38] sm:$0xff] %v378
  %418 = vst [vmem:[#allocation2 + $0x40] sm:$0xff] %v309
  %419 = vst [vmem:[#allocation2 + $0x48] sm:$0xff] %v311
  %420 = vst [vmem:[#allocation2 + $0x50] sm:$0xff] %v382
  %421 = vst [vmem:[#allocation2 + $0x58] sm:$0xff] %v384
  %422 = vst [vmem:[#allocation2 + $0x60] sm:$0xff] %v313
  %423 = vst [vmem:[#allocation2 + $0x68] sm:$0xff] %v315
  %424 = vst [vmem:[#allocation2 + $0x70] sm:$0xff] %v386
  %425 = vst [vmem:[#allocation2 + $0x78] sm:$0xff] %v388
  %426 = vst [vmem:[#allocation2 + $0x80] sm:$0xff] %v319
  %427 = vst [vmem:[#allocation2 + $0x88] sm:$0xff] %v321
  %428 = vst [vmem:[#allocation2 + $0x90] sm:$0xff] %v392
  %429 = vst [vmem:[#allocation2 + $0x98] sm:$0xff] %v394
  %430 = vst [vmem:[#allocation2 + $0xa0] sm:$0xff] %v323
  %431 = vst [vmem:[#allocation2 + $0xa8] sm:$0xff] %v325
  %432 = vst [vmem:[#allocation2 + $0xb0] sm:$0xff] %v396
  %433 = vst [vmem:[#allocation2 + $0xb8] sm:$0xff] %v398
  %434 = vst [vmem:[#allocation2 + $0xc0] sm:$0xff] %v329
  %435 = vst [vmem:[#allocation2 + $0xc8] sm:$0xff] %v331
  %436 = vst [vmem:[#allocation2 + $0xd0] sm:$0xff] %v402
  %437 = vst [vmem:[#allocation2 + $0xd8] sm:$0xff] %v404
  %438 = vst [vmem:[#allocation2 + $0xe0] sm:$0xff] %v333
  %439 = vst [vmem:[#allocation2 + $0xe8] sm:$0xff] %v335
  %440 = vst [vmem:[#allocation2 + $0xf0] sm:$0xff] %v406
  %441 = vst [vmem:[#allocation2 + $0xf8] sm:$0xff] %v408
  %v442 = vld [vmem:[%s2] sm:$0xff]
  %v443 = vld [vmem:[%s2 + $0x8] sm:$0xff]
  %v444 = vld [vmem:[%s2 + $0x10] sm:$0xff]
  %v445 = vld [vmem:[%s2 + $0x18] sm:$0xff]
  %v446 = vld [vmem:[%s2 + $0x20] sm:$0xff]
  %v447 = vld [vmem:[%s2 + $0x28] sm:$0xff]
  %v448 = vld [vmem:[%s2 + $0x30] sm:$0xff]
  %v449 = vld [vmem:[%s2 + $0x38] sm:$0xff]
  %v450 = vld [vmem:[%s2 + $0x40] sm:$0xff]
  %v451 = vld [vmem:[%s2 + $0x48] sm:$0xff]
  %v452 = vld [vmem:[%s2 + $0x50] sm:$0xff]
  %v453 = vld [vmem:[%s2 + $0x58] sm:$0xff]
  %v454 = vld [vmem:[%s2 + $0x60] sm:$0xff]
  %v455 = vld [vmem:[%s2 + $0x68] sm:$0xff]
  %v456 = vld [vmem:[%s2 + $0x70] sm:$0xff]
  %v457 = vld [vmem:[%s2 + $0x78] sm:$0xff]
  %v458 = vld [vmem:[%s2 + $0x80] sm:$0xff]
  %v459 = vld [vmem:[%s2 + $0x88] sm:$0xff]
  %v460 = vld [vmem:[%s2 + $0x90] sm:$0xff]
  %v461 = vld [vmem:[%s2 + $0x98] sm:$0xff]
  %v462 = vld [vmem:[%s2 + $0xa0] sm:$0xff]
  %v463 = vld [vmem:[%s2 + $0xa8] sm:$0xff]
  %v464 = vld [vmem:[%s2 + $0xb0] sm:$0xff]
  %v465 = vld [vmem:[%s2 + $0xb8] sm:$0xff]
  %v466 = vld [vmem:[%s2 + $0xc0] sm:$0xff]
  %v467 = vld [vmem:[%s2 + $0xc8] sm:$0xff]
  %v468 = vld [vmem:[%s2 + $0xd0] sm:$0xff]
  %v469 = vld [vmem:[%s2 + $0xd8] sm:$0xff]
  %v470 = vld [vmem:[%s2 + $0xe0] sm:$0xff]
  %v471 = vld [vmem:[%s2 + $0xe8] sm:$0xff]
  %v472 = vld [vmem:[%s2 + $0xf0] sm:$0xff]
  %v473 = vld [vmem:[%s2 + $0xf8] sm:$0xff]
  %v474 = vld [vmem:[#allocation2] sm:$0xff]
  %v475 = vld [vmem:[#allocation2 + $0x8] sm:$0xff]
  %v476 = vld [vmem:[#allocation2 + $0x10] sm:$0xff]
  %v477 = vld [vmem:[#allocation2 + $0x18] sm:$0xff]
  %v510 = vunpack.c.l.b16 %v442
  %v511 = vunpack.c.h.b16 %v442
  %v512 = vunpack.c.l.b16 %v443
  %v513 = vunpack.c.h.b16 %v443
  %v514 = vunpack.c.l.b16 %v444
  %v515 = vunpack.c.h.b16 %v444
  %v516 = vunpack.c.l.b16 %v445
  %v517 = vunpack.c.h.b16 %v445
  %v518 = vunpack.c.l.b16 %v446
  %v519 = vunpack.c.h.b16 %v446
  %v520 = vunpack.c.l.b16 %v447
  %v521 = vunpack.c.h.b16 %v447
  %v522 = vunpack.c.l.b16 %v448
  %v523 = vunpack.c.h.b16 %v448
  %v524 = vunpack.c.l.b16 %v449
  %v525 = vunpack.c.h.b16 %v449
  %v526 = vunpack.c.l.b16 %v450
  %v527 = vunpack.c.h.b16 %v450
  %v528 = vunpack.c.l.b16 %v451
  %v529 = vunpack.c.h.b16 %v451
  %v530 = vunpack.c.l.b16 %v452
  %v531 = vunpack.c.h.b16 %v452
  %v532 = vunpack.c.l.b16 %v453
  %v533 = vunpack.c.h.b16 %v453
  %v534 = vunpack.c.l.b16 %v454
  %v535 = vunpack.c.h.b16 %v454
  %v536 = vunpack.c.l.b16 %v455
  %v537 = vunpack.c.h.b16 %v455
  %v538 = vunpack.c.l.b16 %v456
  %v539 = vunpack.c.h.b16 %v456
  %v540 = vunpack.c.l.b16 %v457
  %v541 = vunpack.c.h.b16 %v457
  %v542 = vunpack.c.l.b16 %v458
  %v543 = vunpack.c.h.b16 %v458
  %v544 = vunpack.c.l.b16 %v459
  %v545 = vunpack.c.h.b16 %v459
  %v546 = vunpack.c.l.b16 %v460
  %v547 = vunpack.c.h.b16 %v460
  %v548 = vunpack.c.l.b16 %v461
  %v549 = vunpack.c.h.b16 %v461
  %v550 = vunpack.c.l.b16 %v462
  %v551 = vunpack.c.h.b16 %v462
  %v552 = vunpack.c.l.b16 %v463
  %v553 = vunpack.c.h.b16 %v463
  %v554 = vunpack.c.l.b16 %v464
  %v555 = vunpack.c.h.b16 %v464
  %v556 = vunpack.c.l.b16 %v465
  %v557 = vunpack.c.h.b16 %v465
  %v558 = vunpack.c.l.b16 %v466
  %v559 = vunpack.c.h.b16 %v466
  %v560 = vunpack.c.l.b16 %v467
  %v561 = vunpack.c.h.b16 %v467
  %v562 = vunpack.c.l.b16 %v468
  %v563 = vunpack.c.h.b16 %v468
  %v564 = vunpack.c.l.b16 %v469
  %v565 = vunpack.c.h.b16 %v469
  %v566 = vunpack.c.l.b16 %v470
  %v567 = vunpack.c.h.b16 %v470
  %v568 = vunpack.c.l.b16 %v471
  %v569 = vunpack.c.h.b16 %v471
  %v570 = vunpack.c.l.b16 %v472
  %v571 = vunpack.c.h.b16 %v472
  %v572 = vunpack.c.l.b16 %v473
  %v573 = vunpack.c.h.b16 %v473
  %v574 = vpack.c.b16 %v514, %v510
  %v575 = vpack.c.b16 %v515, %v511
  %v576 = vpack.c.b16 %v516, %v512
  %v577 = vpack.c.b16 %v517, %v513
  %v578 = vpack.c.b16 %v522, %v518
  %v579 = vpack.c.b16 %v523, %v519
  %v580 = vpack.c.b16 %v524, %v520
  %v581 = vpack.c.b16 %v525, %v521
  %v582 = vpack.c.b16 %v530, %v526
  %v583 = vpack.c.b16 %v531, %v527
  %v584 = vpack.c.b16 %v532, %v528
  %v585 = vpack.c.b16 %v533, %v529
  %v586 = vpack.c.b16 %v538, %v534
  %v587 = vpack.c.b16 %v539, %v535
  %v588 = vpack.c.b16 %v540, %v536
  %v589 = vpack.c.b16 %v541, %v537
  %v590 = vpack.c.b16 %v546, %v542
  %v591 = vpack.c.b16 %v547, %v543
  %v592 = vpack.c.b16 %v548, %v544
  %v593 = vpack.c.b16 %v549, %v545
  %v594 = vpack.c.b16 %v554, %v550
  %v595 = vpack.c.b16 %v555, %v551
  %v596 = vpack.c.b16 %v556, %v552
  %v597 = vpack.c.b16 %v557, %v553
  %v598 = vpack.c.b16 %v562, %v558
  %v599 = vpack.c.b16 %v563, %v559
  %v600 = vpack.c.b16 %v564, %v560
  %v601 = vpack.c.b16 %v565, %v561
  %v602 = vpack.c.b16 %v570, %v566
  %v603 = vpack.c.b16 %v571, %v567
  %v604 = vpack.c.b16 %v572, %v568
  %v605 = vpack.c.b16 %v573, %v569
  %638 = vmatprep.subr.bf16.mxu0 %v575
  %639 = vmatpush1.bf16.msra.mxu0 %v574
  %640 = vmatprep.subr.bf16.mxu0 %v579
  %641 = vmatpush1.bf16.msra.mxu0 %v578
  %642 = vmatprep.subr.bf16.mxu0 %v583
  %643 = vmatpush1.bf16.msra.mxu0 %v582
  %644 = vmatprep.subr.bf16.mxu0 %v587
  %645 = vmatpush1.bf16.msra.mxu0 %v586
  %646 = vmatprep.subr.bf16.mxu0 %v591
  %647 = vmatpush1.bf16.msra.mxu0 %v590
  %648 = vmatprep.subr.bf16.mxu0 %v595
  %649 = vmatpush1.bf16.msra.mxu0 %v594
  %650 = vmatprep.subr.bf16.mxu0 %v599
  %651 = vmatpush1.bf16.msra.mxu0 %v598
  %652 = vmatprep.subr.bf16.mxu0 %v603
  %653 = vmatpush1.bf16.msra.mxu0 %v602
  %654 = vmatprep.subr.bf16.mxu0 0
  %655 = vmatpush1.bf16.msra.mxu0 0
  %656 = vmatprep.subr.bf16.mxu0 0
  %657 = vmatpush1.bf16.msra.mxu0 0
  %658 = vmatprep.subr.bf16.mxu0 0
  %659 = vmatpush1.bf16.msra.mxu0 0
  %660 = vmatprep.subr.bf16.mxu0 0
  %661 = vmatpush1.bf16.msra.mxu0 0
  %662 = vmatprep.subr.bf16.mxu0 0
  %663 = vmatpush1.bf16.msra.mxu0 0
  %664 = vmatprep.subr.bf16.mxu0 0
  %665 = vmatpush1.bf16.msra.mxu0 0
  %666 = vmatprep.subr.bf16.mxu0 0
  %667 = vmatpush1.bf16.msra.mxu0 0
  %668 = vmatprep.subr.bf16.mxu0 0
  %669 = vmatpush1.bf16.msra.mxu0 0
  %670 = vmatprep.mubr.bf16.mxu0 0
  %671 = vmatmul.mubr.bf16.gmra.mrb[0].mxu0 0
  %v672 = vpop.f32.mrb[0].mxu0
  %v673 = vadd.f32 %v474, %v672
  %v674 = vpop.f32.mrb[0].mxu0
  %v675 = vadd.f32 %v475, %v674
  %v676 = vpop.f32.mrb[0].mxu0
  %v677 = vpop.f32.mrb[0].mxu0
  %678 = vdwg.mxu0
  %679 = vmatprep.subr.bf16.mxu0 %v577
  %680 = vmatpush1.bf16.msra.mxu0 %v576
  %681 = vmatprep.subr.bf16.mxu0 %v581
  %682 = vmatpush1.bf16.msra.mxu0 %v580
  %683 = vmatprep.subr.bf16.mxu0 %v585
  %684 = vmatpush1.bf16.msra.mxu0 %v584
  %685 = vmatprep.subr.bf16.mxu0 %v589
  %686 = vmatpush1.bf16.msra.mxu0 %v588
  %687 = vmatprep.subr.bf16.mxu0 %v593
  %688 = vmatpush1.bf16.msra.mxu0 %v592
  %689 = vmatprep.subr.bf16.mxu0 %v597
  %690 = vmatpush1.bf16.msra.mxu0 %v596
  %691 = vmatprep.subr.bf16.mxu0 %v601
  %692 = vmatpush1.bf16.msra.mxu0 %v600
  %693 = vmatprep.subr.bf16.mxu0 %v605
  %694 = vmatpush1.bf16.msra.mxu0 %v604
  %695 = vmatprep.subr.bf16.mxu0 0
  %696 = vmatpush1.bf16.msra.mxu0 0
  %697 = vmatprep.subr.bf16.mxu0 0
  %698 = vmatpush1.bf16.msra.mxu0 0
  %699 = vmatprep.subr.bf16.mxu0 0
  %700 = vmatpush1.bf16.msra.mxu0 0
  %701 = vmatprep.subr.bf16.mxu0 0
  %702 = vmatpush1.bf16.msra.mxu0 0
  %703 = vmatprep.subr.bf16.mxu0 0
  %704 = vmatpush1.bf16.msra.mxu0 0
  %705 = vmatprep.subr.bf16.mxu0 0
  %706 = vmatpush1.bf16.msra.mxu0 0
  %707 = vmatprep.subr.bf16.mxu0 0
  %708 = vmatpush1.bf16.msra.mxu0 0
  %709 = vmatprep.subr.bf16.mxu0 0
  %710 = vmatpush1.bf16.msra.mxu0 0
  %711 = vmatprep.mubr.bf16.mxu0 0
  %712 = vmatmul.mubr.bf16.gmra.mrb[0].mxu0 0
  %v713 = vpop.f32.mrb[0].mxu0
  %v714 = vadd.f32 %v476, %v713
  %v715 = vpop.f32.mrb[0].mxu0
  %v716 = vadd.f32 %v477, %v715
  %v717 = vpop.f32.mrb[0].mxu0
  %v718 = vpop.f32.mrb[0].mxu0
  %719 = vdwg.mxu0
  %v720 = vxor.u32 %v673, 2147483648
  %v721 = vmul.f32 %v720, 1.442695
  %v722 = vpow.pop %v721
  %v723 = vadd.f32 %v722, 1.0
  %v724 = vrcp.pop %v723
  %v725 = vmul.f32 1.0, %v724
  %v726 = vxor.u32 %v675, 2147483648
  %v727 = vmul.f32 %v726, 1.442695
  %v728 = vpow.pop %v727
  %v729 = vadd.f32 %v728, 1.0
  %v730 = vrcp.pop %v729
  %v731 = vmul.f32 1.0, %v730
  %v732 = vtanh.pop %v714
  %v733 = vxor.u32 %v716, 2147483648
  %v734 = vmul.f32 %v733, 1.442695
  %v735 = vpow.pop %v734
  %v736 = vadd.f32 %v735, 1.0
  %v737 = vrcp.pop %v736
  %v738 = vmul.f32 1.0, %v737
  %v739 = vmul.f32 %v731, 0.0
  %v740 = vmul.f32 %v725, %v732
  %v741 = vadd.f32 %v739, %v740
  %v742 = vtanh.pop %v741
  %v743 = vmul.f32 %v738, %v742
  %v744 = vpack.c.bf16 %v743, %v743
  %745 = vst [vmem:[%s4] sm:$0xf] %v744
  %s746 = scalar_lea.vmem [#allocation2], 32
  %v747 = vld [vmem:[%s746] sm:$0xff]
  %v748 = vld [vmem:[%s746 + $0x8] sm:$0xff]
  %v749 = vld [vmem:[%s746 + $0x10] sm:$0xff]
  %v750 = vld [vmem:[%s746 + $0x18] sm:$0xff]
  %751 = vmatprep.subr.bf16.mxu0 %v575
  %752 = vmatpush1.bf16.msra.mxu0 %v574
  %753 = vmatprep.subr.bf16.mxu0 %v579
  %754 = vmatpush1.bf16.msra.mxu0 %v578
  %755 = vmatprep.subr.bf16.mxu0 %v583
  %756 = vmatpush1.bf16.msra.mxu0 %v582
  %757 = vmatprep.subr.bf16.mxu0 %v587
  %758 = vmatpush1.bf16.msra.mxu0 %v586
  %759 = vmatprep.subr.bf16.mxu0 %v591
  %760 = vmatpush1.bf16.msra.mxu0 %v590
  %761 = vmatprep.subr.bf16.mxu0 %v595
  %762 = vmatpush1.bf16.msra.mxu0 %v594
  %763 = vmatprep.subr.bf16.mxu0 %v599
  %764 = vmatpush1.bf16.msra.mxu0 %v598
  %765 = vmatprep.subr.bf16.mxu0 %v603
  %766 = vmatpush1.bf16.msra.mxu0 %v602
  %767 = vmatprep.subr.bf16.mxu0 0
  %768 = vmatpush1.bf16.msra.mxu0 0
  %769 = vmatprep.subr.bf16.mxu0 0
  %770 = vmatpush1.bf16.msra.mxu0 0
  %771 = vmatprep.subr.bf16.mxu0 0
  %772 = vmatpush1.bf16.msra.mxu0 0
  %773 = vmatprep.subr.bf16.mxu0 0
  %774 = vmatpush1.bf16.msra.mxu0 0
  %775 = vmatprep.subr.bf16.mxu0 0
  %776 = vmatpush1.bf16.msra.mxu0 0
  %777 = vmatprep.subr.bf16.mxu0 0
  %778 = vmatpush1.bf16.msra.mxu0 0
  %779 = vmatprep.subr.bf16.mxu0 0
  %780 = vmatpush1.bf16.msra.mxu0 0
  %781 = vmatprep.subr.bf16.mxu0 0
  %782 = vmatpush1.bf16.msra.mxu0 0
  %783 = vmatprep.mubr.bf16.mxu0 0
  %784 = vmatmul.mubr.bf16.gmra.mrb[0].mxu0 %v744
  %v785 = vpop.f32.mrb[0].mxu0
  %v786 = vadd.f32 %v747, %v785
  %v787 = vpop.f32.mrb[0].mxu0
  %v788 = vadd.f32 %v748, %v787
  %v789 = vpop.f32.mrb[0].mxu0
  %v790 = vpop.f32.mrb[0].mxu0
  %791 = vdwg.mxu0
  %792 = vmatprep.subr.bf16.mxu0 %v577
  %793 = vmatpush1.bf16.msra.mxu0 %v576
  %794 = vmatprep.subr.bf16.mxu0 %v581
  %795 = vmatpush1.bf16.msra.mxu0 %v580
  %796 = vmatprep.subr.bf16.mxu0 %v585
  %797 = vmatpush1.bf16.msra.mxu0 %v584
  %798 = vmatprep.subr.bf16.mxu0 %v589
  %799 = vmatpush1.bf16.msra.mxu0 %v588
  %800 = vmatprep.subr.bf16.mxu0 %v593
  %801 = vmatpush1.bf16.msra.mxu0 %v592
  %802 = vmatprep.subr.bf16.mxu0 %v597
  %803 = vmatpush1.bf16.msra.mxu0 %v596
  %804 = vmatprep.subr.bf16.mxu0 %v601
  %805 = vmatpush1.bf16.msra.mxu0 %v600
  %806 = vmatprep.subr.bf16.mxu0 %v605
  %807 = vmatpush1.bf16.msra.mxu0 %v604
  %808 = vmatprep.subr.bf16.mxu0 0
  %809 = vmatpush1.bf16.msra.mxu0 0
  %810 = vmatprep.subr.bf16.mxu0 0
  %811 = vmatpush1.bf16.msra.mxu0 0
  %812 = vmatprep.subr.bf16.mxu0 0
  %813 = vmatpush1.bf16.msra.mxu0 0
  %814 = vmatprep.subr.bf16.mxu0 0
  %815 = vmatpush1.bf16.msra.mxu0 0
  %816 = vmatprep.subr.bf16.mxu0 0
  %817 = vmatpush1.bf16.msra.mxu0 0
  %818 = vmatprep.subr.bf16.mxu0 0
  %819 = vmatpush1.bf16.msra.mxu0 0
  %820 = vmatprep.subr.bf16.mxu0 0
  %821 = vmatpush1.bf16.msra.mxu0 0
  %822 = vmatprep.subr.bf16.mxu0 0
  %823 = vmatpush1.bf16.msra.mxu0 0
  %824 = vmatprep.mubr.bf16.mxu0 0
  %825 = vmatmul.mubr.bf16.gmra.mrb[0].mxu0 %v744
  %v826 = vpop.f32.mrb[0].mxu0
  %v827 = vadd.f32 %v749, %v826
  %v828 = vpop.f32.mrb[0].mxu0
  %v829 = vadd.f32 %v750, %v828
  %v830 = vpop.f32.mrb[0].mxu0
  %v831 = vpop.f32.mrb[0].mxu0
  %832 = vdwg.mxu0
  %v833 = vxor.u32 %v786, 2147483648
  %v834 = vmul.f32 %v833, 1.442695
  %v835 = vpow.pop %v834
  %v836 = vadd.f32 %v835, 1.0
  %v837 = vrcp.pop %v836
  %v838 = vmul.f32 1.0, %v837
  %v839 = vxor.u32 %v788, 2147483648
  %v840 = vmul.f32 %v839, 1.442695
  %v841 = vpow.pop %v840
  %v842 = vadd.f32 %v841, 1.0
  %v843 = vrcp.pop %v842
  %v844 = vmul.f32 1.0, %v843
  %v845 = vtanh.pop %v827
  %v846 = vxor.u32 %v829, 2147483648
  %v847 = vmul.f32 %v846, 1.442695
  %v848 = vpow.pop %v847
  %v849 = vadd.f32 %v848, 1.0
  %v850 = vrcp.pop %v849
  %v851 = vmul.f32 1.0, %v850
  %v852 = vmul.f32 %v844, %v741
  %v853 = vmul.f32 %v838, %v845
  %v854 = vadd.f32 %v852, %v853
  %v855 = vtanh.pop %v854
  %v856 = vmul.f32 %v851, %v855
  %v857 = vpack.c.bf16 %v856, %v856
  %s858 = scalar_lea.vmem %s4, 4
  %859 = vst [vmem:[%s858] sm:$0xf] %v857
  %s860 = scalar_lea.vmem [#allocation2], 64
  %v861 = vld [vmem:[%s860] sm:$0xff]
  %v862 = vld [vmem:[%s860 + $0x8] sm:$0xff]
  %v863 = vld [vmem:[%s860 + $0x10] sm:$0xff]
  %v864 = vld [vmem:[%s860 + $0x18] sm:$0xff]
  %865 = vmatprep.subr.bf16.mxu0 %v575
  %866 = vmatpush1.bf16.msra.mxu0 %v574
  %867 = vmatprep.subr.bf16.mxu0 %v579
  %868 = vmatpush1.bf16.msra.mxu0 %v578
  %869 = vmatprep.subr.bf16.mxu0 %v583
  %870 = vmatpush1.bf16.msra.mxu0 %v582
  %871 = vmatprep.subr.bf16.mxu0 %v587
  %872 = vmatpush1.bf16.msra.mxu0 %v586
  %873 = vmatprep.subr.bf16.mxu0 %v591
  %874 = vmatpush1.bf16.msra.mxu0 %v590
  %875 = vmatprep.subr.bf16.mxu0 %v595
  %876 = vmatpush1.bf16.msra.mxu0 %v594
  %877 = vmatprep.subr.bf16.mxu0 %v599
  %878 = vmatpush1.bf16.msra.mxu0 %v598
  %879 = vmatprep.subr.bf16.mxu0 %v603
  %880 = vmatpush1.bf16.msra.mxu0 %v602
  %881 = vmatprep.subr.bf16.mxu0 0
  %882 = vmatpush1.bf16.msra.mxu0 0
  %883 = vmatprep.subr.bf16.mxu0 0
  %884 = vmatpush1.bf16.msra.mxu0 0
  %885 = vmatprep.subr.bf16.mxu0 0
  %886 = vmatpush1.bf16.msra.mxu0 0
  %887 = vmatprep.subr.bf16.mxu0 0
  %888 = vmatpush1.bf16.msra.mxu0 0
  %889 = vmatprep.subr.bf16.mxu0 0
  %890 = vmatpush1.bf16.msra.mxu0 0
  %891 = vmatprep.subr.bf16.mxu0 0
  %892 = vmatpush1.bf16.msra.mxu0 0
  %893 = vmatprep.subr.bf16.mxu0 0
  %894 = vmatpush1.bf16.msra.mxu0 0
  %895 = vmatprep.subr.bf16.mxu0 0
  %896 = vmatpush1.bf16.msra.mxu0 0
  %897 = vmatprep.mubr.bf16.mxu0 0
  %898 = vmatmul.mubr.bf16.gmra.mrb[0].mxu0 %v857
  %v899 = vpop.f32.mrb[0].mxu0
  %v900 = vadd.f32 %v861, %v899
  %v901 = vpop.f32.mrb[0].mxu0
  %v902 = vadd.f32 %v862, %v901
  %v903 = vpop.f32.mrb[0].mxu0
  %v904 = vpop.f32.mrb[0].mxu0
  %905 = vdwg.mxu0
  %906 = vmatprep.subr.bf16.mxu0 %v577
  %907 = vmatpush1.bf16.msra.mxu0 %v576
  %908 = vmatprep.subr.bf16.mxu0 %v581
  %909 = vmatpush1.bf16.msra.mxu0 %v580
  %910 = vmatprep.subr.bf16.mxu0 %v585
  %911 = vmatpush1.bf16.msra.mxu0 %v584
  %912 = vmatprep.subr.bf16.mxu0 %v589
  %913 = vmatpush1.bf16.msra.mxu0 %v588
  %914 = vmatprep.subr.bf16.mxu0 %v593
  %915 = vmatpush1.bf16.msra.mxu0 %v592
  %916 = vmatprep.subr.bf16.mxu0 %v597
  %917 = vmatpush1.bf16.msra.mxu0 %v596
  %918 = vmatprep.subr.bf16.mxu0 %v601
  %919 = vmatpush1.bf16.msra.mxu0 %v600
  %920 = vmatprep.subr.bf16.mxu0 %v605
  %921 = vmatpush1.bf16.msra.mxu0 %v604
  %922 = vmatprep.subr.bf16.mxu0 0
  %923 = vmatpush1.bf16.msra.mxu0 0
  %924 = vmatprep.subr.bf16.mxu0 0
  %925 = vmatpush1.bf16.msra.mxu0 0
  %926 = vmatprep.subr.bf16.mxu0 0
  %927 = vmatpush1.bf16.msra.mxu0 0
  %928 = vmatprep.subr.bf16.mxu0 0
  %929 = vmatpush1.bf16.msra.mxu0 0
  %930 = vmatprep.subr.bf16.mxu0 0
  %931 = vmatpush1.bf16.msra.mxu0 0
  %932 = vmatprep.subr.bf16.mxu0 0
  %933 = vmatpush1.bf16.msra.mxu0 0
  %934 = vmatprep.subr.bf16.mxu0 0
  %935 = vmatpush1.bf16.msra.mxu0 0
  %936 = vmatprep.subr.bf16.mxu0 0
  %937 = vmatpush1.bf16.msra.mxu0 0
  %938 = vmatprep.mubr.bf16.mxu0 0
  %939 = vmatmul.mubr.bf16.gmra.mrb[0].mxu0 %v857
  %v940 = vpop.f32.mrb[0].mxu0
  %v941 = vadd.f32 %v863, %v940
  %v942 = vpop.f32.mrb[0].mxu0
  %v943 = vadd.f32 %v864, %v942
  %v944 = vpop.f32.mrb[0].mxu0
  %v945 = vpop.f32.mrb[0].mxu0
  %946 = vdwg.mxu0
  %v947 = vxor.u32 %v900, 2147483648
  %v948 = vmul.f32 %v947, 1.442695
  %v949 = vpow.pop %v948
  %v950 = vadd.f32 %v949, 1.0
  %v951 = vrcp.pop %v950
  %v952 = vmul.f32 1.0, %v951
  %v953 = vxor.u32 %v902, 2147483648
  %v954 = vmul.f32 %v953, 1.442695
  %v955 = vpow.pop %v954
  %v956 = vadd.f32 %v955, 1.0
  %v957 = vrcp.pop %v956
  %v958 = vmul.f32 1.0, %v957
  %v959 = vtanh.pop %v941
  %v960 = vxor.u32 %v943, 2147483648
  %v961 = vmul.f32 %v960, 1.442695
  %v962 = vpow.pop %v961
  %v963 = vadd.f32 %v962, 1.0
  %v964 = vrcp.pop %v963
  %v965 = vmul.f32 1.0, %v964
  %v966 = vmul.f32 %v958, %v854
  %v967 = vmul.f32 %v952, %v959
  %v968 = vadd.f32 %v966, %v967
  %v969 = vtanh.pop %v968
  %v970 = vmul.f32 %v965, %v969
  %v971 = vpack.c.bf16 %v970, %v970
  %s972 = scalar_lea.vmem %s4, 8
  %973 = vst [vmem:[%s972] sm:$0xf] %v971
  %s974 = scalar_lea.vmem [#allocation2], 96
  %v975 = vld [vmem:[%s974] sm:$0xff]
  %v976 = vld [vmem:[%s974 + $0x8] sm:$0xff]
  %v977 = vld [vmem:[%s974 + $0x10] sm:$0xff]
  %v978 = vld [vmem:[%s974 + $0x18] sm:$0xff]
  %979 = vmatprep.subr.bf16.mxu0 %v575
  %980 = vmatpush1.bf16.msra.mxu0 %v574
  %981 = vmatprep.subr.bf16.mxu0 %v579
  %982 = vmatpush1.bf16.msra.mxu0 %v578
  %983 = vmatprep.subr.bf16.mxu0 %v583
  %984 = vmatpush1.bf16.msra.mxu0 %v582
  %985 = vmatprep.subr.bf16.mxu0 %v587
  %986 = vmatpush1.bf16.msra.mxu0 %v586
  %987 = vmatprep.subr.bf16.mxu0 %v591
  %988 = vmatpush1.bf16.msra.mxu0 %v590
  %989 = vmatprep.subr.bf16.mxu0 %v595
  %990 = vmatpush1.bf16.msra.mxu0 %v594
  %991 = vmatprep.subr.bf16.mxu0 %v599
  %992 = vmatpush1.bf16.msra.mxu0 %v598
  %993 = vmatprep.subr.bf16.mxu0 %v603
  %994 = vmatpush1.bf16.msra.mxu0 %v602
  %995 = vmatprep.subr.bf16.mxu0 0
  %996 = vmatpush1.bf16.msra.mxu0 0
  %997 = vmatprep.subr.bf16.mxu0 0
  %998 = vmatpush1.bf16.msra.mxu0 0
  %999 = vmatprep.subr.bf16.mxu0 0
  %1000 = vmatpush1.bf16.msra.mxu0 0
  %1001 = vmatprep.subr.bf16.mxu0 0
  %1002 = vmatpush1.bf16.msra.mxu0 0
  %1003 = vmatprep.subr.bf16.mxu0 0
  %1004 = vmatpush1.bf16.msra.mxu0 0
  %1005 = vmatprep.subr.bf16.mxu0 0
  %1006 = vmatpush1.bf16.msra.mxu0 0
  %1007 = vmatprep.subr.bf16.mxu0 0
  %1008 = vmatpush1.bf16.msra.mxu0 0
  %1009 = vmatprep.subr.bf16.mxu0 0
  %1010 = vmatpush1.bf16.msra.mxu0 0
  %1011 = vmatprep.mubr.bf16.mxu0 0
  %1012 = vmatmul.mubr.bf16.gmra.mrb[0].mxu0 %v971
  %v1013 = vpop.f32.mrb[0].mxu0
  %v1014 = vadd.f32 %v975, %v1013
  %v1015 = vpop.f32.mrb[0].mxu0
  %v1016 = vadd.f32 %v976, %v1015
  %v1017 = vpop.f32.mrb[0].mxu0
  %v1018 = vpop.f32.mrb[0].mxu0
  %1019 = vdwg.mxu0
  %1020 = vmatprep.subr.bf16.mxu0 %v577
  %1021 = vmatpush1.bf16.msra.mxu0 %v576
  %1022 = vmatprep.subr.bf16.mxu0 %v581
  %1023 = vmatpush1.bf16.msra.mxu0 %v580
  %1024 = vmatprep.subr.bf16.mxu0 %v585
  %1025 = vmatpush1.bf16.msra.mxu0 %v584
  %1026 = vmatprep.subr.bf16.mxu0 %v589
  %1027 = vmatpush1.bf16.msra.mxu0 %v588
  %1028 = vmatprep.subr.bf16.mxu0 %v593
  %1029 = vmatpush1.bf16.msra.mxu0 %v592
  %1030 = vmatprep.subr.bf16.mxu0 %v597
  %1031 = vmatpush1.bf16.msra.mxu0 %v596
  %1032 = vmatprep.subr.bf16.mxu0 %v601
  %1033 = vmatpush1.bf16.msra.mxu0 %v600
  %1034 = vmatprep.subr.bf16.mxu0 %v605
  %1035 = vmatpush1.bf16.msra.mxu0 %v604
  %1036 = vmatprep.subr.bf16.mxu0 0
  %1037 = vmatpush1.bf16.msra.mxu0 0
  %1038 = vmatprep.subr.bf16.mxu0 0
  %1039 = vmatpush1.bf16.msra.mxu0 0
  %1040 = vmatprep.subr.bf16.mxu0 0
  %1041 = vmatpush1.bf16.msra.mxu0 0
  %1042 = vmatprep.subr.bf16.mxu0 0
  %1043 = vmatpush1.bf16.msra.mxu0 0
  %1044 = vmatprep.subr.bf16.mxu0 0
  %1045 = vmatpush1.bf16.msra.mxu0 0
  %1046 = vmatprep.subr.bf16.mxu0 0
  %1047 = vmatpush1.bf16.msra.mxu0 0
  %1048 = vmatprep.subr.bf16.mxu0 0
  %1049 = vmatpush1.bf16.msra.mxu0 0
  %1050 = vmatprep.subr.bf16.mxu0 0
  %1051 = vmatpush1.bf16.msra.mxu0 0
  %1052 = vmatprep.mubr.bf16.mxu0 0
  %1053 = vmatmul.mubr.bf16.gmra.mrb[0].mxu0 %v971
  %v1054 = vpop.f32.mrb[0].mxu0
  %v1055 = vadd.f32 %v977, %v1054
  %v1056 = vpop.f32.mrb[0].mxu0
  %v1057 = vadd.f32 %v978, %v1056
  %v1058 = vpop.f32.mrb[0].mxu0
  %v1059 = vpop.f32.mrb[0].mxu0
  %1060 = vdwg.mxu0
  %v1061 = vxor.u32 %v1014, 2147483648
  %v1062 = vmul.f32 %v1061, 1.442695
  %v1063 = vpow.pop %v1062
  %v1064 = vadd.f32 %v1063, 1.0
  %v1065 = vrcp.pop %v1064
  %v1066 = vmul.f32 1.0, %v1065
  %v1067 = vxor.u32 %v1016, 2147483648
  %v1068 = vmul.f32 %v1067, 1.442695
  %v1069 = vpow.pop %v1068
  %v1070 = vadd.f32 %v1069, 1.0
  %v1071 = vrcp.pop %v1070
  %v1072 = vmul.f32 1.0, %v1071
  %v1073 = vtanh.pop %v1055
  %v1074 = vxor.u32 %v1057, 2147483648
  %v1075 = vmul.f32 %v1074, 1.442695
  %v1076 = vpow.pop %v1075
  %v1077 = vadd.f32 %v1076, 1.0
  %v1078 = vrcp.pop %v1077
  %v1079 = vmul.f32 1.0, %v1078
  %v1080 = vmul.f32 %v1072, %v968
  %v1081 = vmul.f32 %v1066, %v1073
  %v1082 = vadd.f32 %v1080, %v1081
  %v1083 = vtanh.pop %v1082
  %v1084 = vmul.f32 %v1079, %v1083
  %v1085 = vpack.c.bf16 %v1084, %v1084
  %s1086 = scalar_lea.vmem %s4, 12
  %1087 = vst [vmem:[%s1086] sm:$0xf] %v1085
  %s1088 = scalar_lea.vmem [#allocation2], 128
  %v1089 = vld [vmem:[%s1088] sm:$0xff]
  %v1090 = vld [vmem:[%s1088 + $0x8] sm:$0xff]
  %v1091 = vld [vmem:[%s1088 + $0x10] sm:$0xff]
  %v1092 = vld [vmem:[%s1088 + $0x18] sm:$0xff]
  %1093 = vmatprep.subr.bf16.mxu0 %v575
  %1094 = vmatpush1.bf16.msra.mxu0 %v574
  %1095 = vmatprep.subr.bf16.mxu0 %v579
  %1096 = vmatpush1.bf16.msra.mxu0 %v578
  %1097 = vmatprep.subr.bf16.mxu0 %v583
  %1098 = vmatpush1.bf16.msra.mxu0 %v582
  %1099 = vmatprep.subr.bf16.mxu0 %v587
  %1100 = vmatpush1.bf16.msra.mxu0 %v586
  %1101 = vmatprep.subr.bf16.mxu0 %v591
  %1102 = vmatpush1.bf16.msra.mxu0 %v590
  %1103 = vmatprep.subr.bf16.mxu0 %v595
  %1104 = vmatpush1.bf16.msra.mxu0 %v594
  %1105 = vmatprep.subr.bf16.mxu0 %v599
  %1106 = vmatpush1.bf16.msra.mxu0 %v598
  %1107 = vmatprep.subr.bf16.mxu0 %v603
  %1108 = vmatpush1.bf16.msra.mxu0 %v602
  %1109 = vmatprep.subr.bf16.mxu0 0
  %1110 = vmatpush1.bf16.msra.mxu0 0
  %1111 = vmatprep.subr.bf16.mxu0 0
  %1112 = vmatpush1.bf16.msra.mxu0 0
  %1113 = vmatprep.subr.bf16.mxu0 0
  %1114 = vmatpush1.bf16.msra.mxu0 0
  %1115 = vmatprep.subr.bf16.mxu0 0
  %1116 = vmatpush1.bf16.msra.mxu0 0
  %1117 = vmatprep.subr.bf16.mxu0 0
  %1118 = vmatpush1.bf16.msra.mxu0 0
  %1119 = vmatprep.subr.bf16.mxu0 0
  %1120 = vmatpush1.bf16.msra.mxu0 0
  %1121 = vmatprep.subr.bf16.mxu0 0
  %1122 = vmatpush1.bf16.msra.mxu0 0
  %1123 = vmatprep.subr.bf16.mxu0 0
  %1124 = vmatpush1.bf16.msra.mxu0 0
  %1125 = vmatprep.mubr.bf16.mxu0 0
  %1126 = vmatmul.mubr.bf16.gmra.mrb[0].mxu0 %v1085
  %v1127 = vpop.f32.mrb[0].mxu0
  %v1128 = vadd.f32 %v1089, %v1127
  %v1129 = vpop.f32.mrb[0].mxu0
  %v1130 = vadd.f32 %v1090, %v1129
  %v1131 = vpop.f32.mrb[0].mxu0
  %v1132 = vpop.f32.mrb[0].mxu0
  %1133 = vdwg.mxu0
  %1134 = vmatprep.subr.bf16.mxu0 %v577
  %1135 = vmatpush1.bf16.msra.mxu0 %v576
  %1136 = vmatprep.subr.bf16.mxu0 %v581
  %1137 = vmatpush1.bf16.msra.mxu0 %v580
  %1138 = vmatprep.subr.bf16.mxu0 %v585
  %1139 = vmatpush1.bf16.msra.mxu0 %v584
  %1140 = vmatprep.subr.bf16.mxu0 %v589
  %1141 = vmatpush1.bf16.msra.mxu0 %v588
  %1142 = vmatprep.subr.bf16.mxu0 %v593
  %1143 = vmatpush1.bf16.msra.mxu0 %v592
  %1144 = vmatprep.subr.bf16.mxu0 %v597
  %1145 = vmatpush1.bf16.msra.mxu0 %v596
  %1146 = vmatprep.subr.bf16.mxu0 %v601
  %1147 = vmatpush1.bf16.msra.mxu0 %v600
  %1148 = vmatprep.subr.bf16.mxu0 %v605
  %1149 = vmatpush1.bf16.msra.mxu0 %v604
  %1150 = vmatprep.subr.bf16.mxu0 0
  %1151 = vmatpush1.bf16.msra.mxu0 0
  %1152 = vmatprep.subr.bf16.mxu0 0
  %1153 = vmatpush1.bf16.msra.mxu0 0
  %1154 = vmatprep.subr.bf16.mxu0 0
  %1155 = vmatpush1.bf16.msra.mxu0 0
  %1156 = vmatprep.subr.bf16.mxu0 0
  %1157 = vmatpush1.bf16.msra.mxu0 0
  %1158 = vmatprep.subr.bf16.mxu0 0
  %1159 = vmatpush1.bf16.msra.mxu0 0
  %1160 = vmatprep.subr.bf16.mxu0 0
  %1161 = vmatpush1.bf16.msra.mxu0 0
  %1162 = vmatprep.subr.bf16.mxu0 0
  %1163 = vmatpush1.bf16.msra.mxu0 0
  %1164 = vmatprep.subr.bf16.mxu0 0
  %1165 = vmatpush1.bf16.msra.mxu0 0
  %1166 = vmatprep.mubr.bf16.mxu0 0
  %1167 = vmatmul.mubr.bf16.gmra.mrb[0].mxu0 %v1085
  %v1168 = vpop.f32.mrb[0].mxu0
  %v1169 = vadd.f32 %v1091, %v1168
  %v1170 = vpop.f32.mrb[0].mxu0
  %v1171 = vadd.f32 %v1092, %v1170
  %v1172 = vpop.f32.mrb[0].mxu0
  %v1173 = vpop.f32.mrb[0].mxu0
  %1174 = vdwg.mxu0
  %v1175 = vxor.u32 %v1128, 2147483648
  %v1176 = vmul.f32 %v1175, 1.442695
  %v1177 = vpow.pop %v1176
  %v1178 = vadd.f32 %v1177, 1.0
  %v1179 = vrcp.pop %v1178
  %v1180 = vmul.f32 1.0, %v1179
  %v1181 = vxor.u32 %v1130, 2147483648
  %v1182 = vmul.f32 %v1181, 1.442695
  %v1183 = vpow.pop %v1182
  %v1184 = vadd.f32 %v1183, 1.0
  %v1185 = vrcp.pop %v1184
  %v1186 = vmul.f32 1.0, %v1185
  %v1187 = vtanh.pop %v1169
  %v1188 = vxor.u32 %v1171, 2147483648
  %v1189 = vmul.f32 %v1188, 1.442695
  %v1190 = vpow.pop %v1189
  %v1191 = vadd.f32 %v1190, 1.0
  %v1192 = vrcp.pop %v1191
  %v1193 = vmul.f32 1.0, %v1192
  %v1194 = vmul.f32 %v1186, %v1082
  %v1195 = vmul.f32 %v1180, %v1187
  %v1196 = vadd.f32 %v1194, %v1195
  %v1197 = vtanh.pop %v1196
  %v1198 = vmul.f32 %v1193, %v1197
  %v1199 = vpack.c.bf16 %v1198, %v1198
  %s1200 = scalar_lea.vmem %s4, 16
  %1201 = vst [vmem:[%s1200] sm:$0xf] %v1199
  %s1202 = scalar_lea.vmem [#allocation2], 160
  %v1203 = vld [vmem:[%s1202] sm:$0xff]
  %v1204 = vld [vmem:[%s1202 + $0x8] sm:$0xff]
  %v1205 = vld [vmem:[%s1202 + $0x10] sm:$0xff]
  %v1206 = vld [vmem:[%s1202 + $0x18] sm:$0xff]
  %1207 = vmatprep.subr.bf16.mxu0 %v575
  %1208 = vmatpush1.bf16.msra.mxu0 %v574
  %1209 = vmatprep.subr.bf16.mxu0 %v579
  %1210 = vmatpush1.bf16.msra.mxu0 %v578
  %1211 = vmatprep.subr.bf16.mxu0 %v583
  %1212 = vmatpush1.bf16.msra.mxu0 %v582
  %1213 = vmatprep.subr.bf16.mxu0 %v587
  %1214 = vmatpush1.bf16.msra.mxu0 %v586
  %1215 = vmatprep.subr.bf16.mxu0 %v591
  %1216 = vmatpush1.bf16.msra.mxu0 %v590
  %1217 = vmatprep.subr.bf16.mxu0 %v595
  %1218 = vmatpush1.bf16.msra.mxu0 %v594
  %1219 = vmatprep.subr.bf16.mxu0 %v599
  %1220 = vmatpush1.bf16.msra.mxu0 %v598
  %1221 = vmatprep.subr.bf16.mxu0 %v603
  %1222 = vmatpush1.bf16.msra.mxu0 %v602
  %1223 = vmatprep.subr.bf16.mxu0 0
  %1224 = vmatpush1.bf16.msra.mxu0 0
  %1225 = vmatprep.subr.bf16.mxu0 0
  %1226 = vmatpush1.bf16.msra.mxu0 0
  %1227 = vmatprep.subr.bf16.mxu0 0
  %1228 = vmatpush1.bf16.msra.mxu0 0
  %1229 = vmatprep.subr.bf16.mxu0 0
  %1230 = vmatpush1.bf16.msra.mxu0 0
  %1231 = vmatprep.subr.bf16.mxu0 0
  %1232 = vmatpush1.bf16.msra.mxu0 0
  %1233 = vmatprep.subr.bf16.mxu0 0
  %1234 = vmatpush1.bf16.msra.mxu0 0
  %1235 = vmatprep.subr.bf16.mxu0 0
  %1236 = vmatpush1.bf16.msra.mxu0 0
  %1237 = vmatprep.subr.bf16.mxu0 0
  %1238 = vmatpush1.bf16.msra.mxu0 0
  %1239 = vmatprep.mubr.bf16.mxu0 0
  %1240 = vmatmul.mubr.bf16.gmra.mrb[0].mxu0 %v1199
  %v1241 = vpop.f32.mrb[0].mxu0
  %v1242 = vadd.f32 %v1203, %v1241
  %v1243 = vpop.f32.mrb[0].mxu0
  %v1244 = vadd.f32 %v1204, %v1243
  %v1245 = vpop.f32.mrb[0].mxu0
  %v1246 = vpop.f32.mrb[0].mxu0
  %1247 = vdwg.mxu0
  %1248 = vmatprep.subr.bf16.mxu0 %v577
  %1249 = vmatpush1.bf16.msra.mxu0 %v576
  %1250 = vmatprep.subr.bf16.mxu0 %v581
  %1251 = vmatpush1.bf16.msra.mxu0 %v580
  %1252 = vmatprep.subr.bf16.mxu0 %v585
  %1253 = vmatpush1.bf16.msra.mxu0 %v584
  %1254 = vmatprep.subr.bf16.mxu0 %v589
  %1255 = vmatpush1.bf16.msra.mxu0 %v588
  %1256 = vmatprep.subr.bf16.mxu0 %v593
  %1257 = vmatpush1.bf16.msra.mxu0 %v592
  %1258 = vmatprep.subr.bf16.mxu0 %v597
  %1259 = vmatpush1.bf16.msra.mxu0 %v596
  %1260 = vmatprep.subr.bf16.mxu0 %v601
  %1261 = vmatpush1.bf16.msra.mxu0 %v600
  %1262 = vmatprep.subr.bf16.mxu0 %v605
  %1263 = vmatpush1.bf16.msra.mxu0 %v604
  %1264 = vmatprep.subr.bf16.mxu0 0
  %1265 = vmatpush1.bf16.msra.mxu0 0
  %1266 = vmatprep.subr.bf16.mxu0 0
  %1267 = vmatpush1.bf16.msra.mxu0 0
  %1268 = vmatprep.subr.bf16.mxu0 0
  %1269 = vmatpush1.bf16.msra.mxu0 0
  %1270 = vmatprep.subr.bf16.mxu0 0
  %1271 = vmatpush1.bf16.msra.mxu0 0
  %1272 = vmatprep.subr.bf16.mxu0 0
  %1273 = vmatpush1.bf16.msra.mxu0 0
  %1274 = vmatprep.subr.bf16.mxu0 0
  %1275 = vmatpush1.bf16.msra.mxu0 0
  %1276 = vmatprep.subr.bf16.mxu0 0
  %1277 = vmatpush1.bf16.msra.mxu0 0
  %1278 = vmatprep.subr.bf16.mxu0 0
  %1279 = vmatpush1.bf16.msra.mxu0 0
  %1280 = vmatprep.mubr.bf16.mxu0 0
  %1281 = vmatmul.mubr.bf16.gmra.mrb[0].mxu0 %v1199
  %v1282 = vpop.f32.mrb[0].mxu0
  %v1283 = vadd.f32 %v1205, %v1282
  %v1284 = vpop.f32.mrb[0].mxu0
  %v1285 = vadd.f32 %v1206, %v1284
  %v1286 = vpop.f32.mrb[0].mxu0
  %v1287 = vpop.f32.mrb[0].mxu0
  %1288 = vdwg.mxu0
  %v1289 = vxor.u32 %v1242, 2147483648
  %v1290 = vmul.f32 %v1289, 1.442695
  %v1291 = vpow.pop %v1290
  %v1292 = vadd.f32 %v1291, 1.0
  %v1293 = vrcp.pop %v1292
  %v1294 = vmul.f32 1.0, %v1293
  %v1295 = vxor.u32 %v1244, 2147483648
  %v1296 = vmul.f32 %v1295, 1.442695
  %v1297 = vpow.pop %v1296
  %v1298 = vadd.f32 %v1297, 1.0
  %v1299 = vrcp.pop %v1298
  %v1300 = vmul.f32 1.0, %v1299
  %v1301 = vtanh.pop %v1283
  %v1302 = vxor.u32 %v1285, 2147483648
  %v1303 = vmul.f32 %v1302, 1.442695
  %v1304 = vpow.pop %v1303
  %v1305 = vadd.f32 %v1304, 1.0
  %v1306 = vrcp.pop %v1305
  %v1307 = vmul.f32 1.0, %v1306
  %v1308 = vmul.f32 %v1300, %v1196
  %v1309 = vmul.f32 %v1294, %v1301
  %v1310 = vadd.f32 %v1308, %v1309
  %v1311 = vtanh.pop %v1310
  %v1312 = vmul.f32 %v1307, %v1311
  %v1313 = vpack.c.bf16 %v1312, %v1312
  %s1314 = scalar_lea.vmem %s4, 20
  %1315 = vst [vmem:[%s1314] sm:$0xf] %v1313
  %s1316 = scalar_lea.vmem [#allocation2], 192
  %v1317 = vld [vmem:[%s1316] sm:$0xff]
  %v1318 = vld [vmem:[%s1316 + $0x8] sm:$0xff]
  %v1319 = vld [vmem:[%s1316 + $0x10] sm:$0xff]
  %v1320 = vld [vmem:[%s1316 + $0x18] sm:$0xff]
  %1321 = vmatprep.subr.bf16.mxu0 %v575
  %1322 = vmatpush1.bf16.msra.mxu0 %v574
  %1323 = vmatprep.subr.bf16.mxu0 %v579
  %1324 = vmatpush1.bf16.msra.mxu0 %v578
  %1325 = vmatprep.subr.bf16.mxu0 %v583
  %1326 = vmatpush1.bf16.msra.mxu0 %v582
  %1327 = vmatprep.subr.bf16.mxu0 %v587
  %1328 = vmatpush1.bf16.msra.mxu0 %v586
  %1329 = vmatprep.subr.bf16.mxu0 %v591
  %1330 = vmatpush1.bf16.msra.mxu0 %v590
  %1331 = vmatprep.subr.bf16.mxu0 %v595
  %1332 = vmatpush1.bf16.msra.mxu0 %v594
  %1333 = vmatprep.subr.bf16.mxu0 %v599
  %1334 = vmatpush1.bf16.msra.mxu0 %v598
  %1335 = vmatprep.subr.bf16.mxu0 %v603
  %1336 = vmatpush1.bf16.msra.mxu0 %v602
  %1337 = vmatprep.subr.bf16.mxu0 0
  %1338 = vmatpush1.bf16.msra.mxu0 0
  %1339 = vmatprep.subr.bf16.mxu0 0
  %1340 = vmatpush1.bf16.msra.mxu0 0
  %1341 = vmatprep.subr.bf16.mxu0 0
  %1342 = vmatpush1.bf16.msra.mxu0 0
  %1343 = vmatprep.subr.bf16.mxu0 0
  %1344 = vmatpush1.bf16.msra.mxu0 0
  %1345 = vmatprep.subr.bf16.mxu0 0
  %1346 = vmatpush1.bf16.msra.mxu0 0
  %1347 = vmatprep.subr.bf16.mxu0 0
  %1348 = vmatpush1.bf16.msra.mxu0 0
  %1349 = vmatprep.subr.bf16.mxu0 0
  %1350 = vmatpush1.bf16.msra.mxu0 0
  %1351 = vmatprep.subr.bf16.mxu0 0
  %1352 = vmatpush1.bf16.msra.mxu0 0
  %1353 = vmatprep.mubr.bf16.mxu0 0
  %1354 = vmatmul.mubr.bf16.gmra.mrb[0].mxu0 %v1313
  %v1355 = vpop.f32.mrb[0].mxu0
  %v1356 = vadd.f32 %v1317, %v1355
  %v1357 = vpop.f32.mrb[0].mxu0
  %v1358 = vadd.f32 %v1318, %v1357
  %v1359 = vpop.f32.mrb[0].mxu0
  %v1360 = vpop.f32.mrb[0].mxu0
  %1361 = vdwg.mxu0
  %1362 = vmatprep.subr.bf16.mxu0 %v577
  %1363 = vmatpush1.bf16.msra.mxu0 %v576
  %1364 = vmatprep.subr.bf16.mxu0 %v581
  %1365 = vmatpush1.bf16.msra.mxu0 %v580
  %1366 = vmatprep.subr.bf16.mxu0 %v585
  %1367 = vmatpush1.bf16.msra.mxu0 %v584
  %1368 = vmatprep.subr.bf16.mxu0 %v589
  %1369 = vmatpush1.bf16.msra.mxu0 %v588
  %1370 = vmatprep.subr.bf16.mxu0 %v593
  %1371 = vmatpush1.bf16.msra.mxu0 %v592
  %1372 = vmatprep.subr.bf16.mxu0 %v597
  %1373 = vmatpush1.bf16.msra.mxu0 %v596
  %1374 = vmatprep.subr.bf16.mxu0 %v601
  %1375 = vmatpush1.bf16.msra.mxu0 %v600
  %1376 = vmatprep.subr.bf16.mxu0 %v605
  %1377 = vmatpush1.bf16.msra.mxu0 %v604
  %1378 = vmatprep.subr.bf16.mxu0 0
  %1379 = vmatpush1.bf16.msra.mxu0 0
  %1380 = vmatprep.subr.bf16.mxu0 0
  %1381 = vmatpush1.bf16.msra.mxu0 0
  %1382 = vmatprep.subr.bf16.mxu0 0
  %1383 = vmatpush1.bf16.msra.mxu0 0
  %1384 = vmatprep.subr.bf16.mxu0 0
  %1385 = vmatpush1.bf16.msra.mxu0 0
  %1386 = vmatprep.subr.bf16.mxu0 0
  %1387 = vmatpush1.bf16.msra.mxu0 0
  %1388 = vmatprep.subr.bf16.mxu0 0
  %1389 = vmatpush1.bf16.msra.mxu0 0
  %1390 = vmatprep.subr.bf16.mxu0 0
  %1391 = vmatpush1.bf16.msra.mxu0 0
  %1392 = vmatprep.subr.bf16.mxu0 0
  %1393 = vmatpush1.bf16.msra.mxu0 0
  %1394 = vmatprep.mubr.bf16.mxu0 0
  %1395 = vmatmul.mubr.bf16.gmra.mrb[0].mxu0 %v1313
  %v1396 = vpop.f32.mrb[0].mxu0
  %v1397 = vadd.f32 %v1319, %v1396
  %v1398 = vpop.f32.mrb[0].mxu0
  %v1399 = vadd.f32 %v1320, %v1398
  %v1400 = vpop.f32.mrb[0].mxu0
  %v1401 = vpop.f32.mrb[0].mxu0
  %1402 = vdwg.mxu0
  %v1403 = vxor.u32 %v1356, 2147483648
  %v1404 = vmul.f32 %v1403, 1.442695
  %v1405 = vpow.pop %v1404
  %v1406 = vadd.f32 %v1405, 1.0
  %v1407 = vrcp.pop %v1406
  %v1408 = vmul.f32 1.0, %v1407
  %v1409 = vxor.u32 %v1358, 2147483648
  %v1410 = vmul.f32 %v1409, 1.442695
  %v1411 = vpow.pop %v1410
  %v1412 = vadd.f32 %v1411, 1.0
  %v1413 = vrcp.pop %v1412
  %v1414 = vmul.f32 1.0, %v1413
  %v1415 = vtanh.pop %v1397
  %v1416 = vxor.u32 %v1399, 2147483648
  %v1417 = vmul.f32 %v1416, 1.442695
  %v1418 = vpow.pop %v1417
  %v1419 = vadd.f32 %v1418, 1.0
  %v1420 = vrcp.pop %v1419
  %v1421 = vmul.f32 1.0, %v1420
  %v1422 = vmul.f32 %v1414, %v1310
  %v1423 = vmul.f32 %v1408, %v1415
  %v1424 = vadd.f32 %v1422, %v1423
  %v1425 = vtanh.pop %v1424
  %v1426 = vmul.f32 %v1421, %v1425
  %v1427 = vpack.c.bf16 %v1426, %v1426
  %s1428 = scalar_lea.vmem %s4, 24
  %1429 = vst [vmem:[%s1428] sm:$0xf] %v1427
  %s1430 = scalar_lea.vmem [#allocation2], 224
  %v1431 = vld [vmem:[%s1430] sm:$0xff]
  %v1432 = vld [vmem:[%s1430 + $0x8] sm:$0xff]
  %v1433 = vld [vmem:[%s1430 + $0x10] sm:$0xff]
  %v1434 = vld [vmem:[%s1430 + $0x18] sm:$0xff]
  %1435 = vmatprep.subr.bf16.mxu0 %v575
  %1436 = vmatpush1.bf16.msra.mxu0 %v574
  %1437 = vmatprep.subr.bf16.mxu0 %v579
  %1438 = vmatpush1.bf16.msra.mxu0 %v578
  %1439 = vmatprep.subr.bf16.mxu0 %v583
  %1440 = vmatpush1.bf16.msra.mxu0 %v582
  %1441 = vmatprep.subr.bf16.mxu0 %v587
  %1442 = vmatpush1.bf16.msra.mxu0 %v586
  %1443 = vmatprep.subr.bf16.mxu0 %v591
  %1444 = vmatpush1.bf16.msra.mxu0 %v590
  %1445 = vmatprep.subr.bf16.mxu0 %v595
  %1446 = vmatpush1.bf16.msra.mxu0 %v594
  %1447 = vmatprep.subr.bf16.mxu0 %v599
  %1448 = vmatpush1.bf16.msra.mxu0 %v598
  %1449 = vmatprep.subr.bf16.mxu0 %v603
  %1450 = vmatpush1.bf16.msra.mxu0 %v602
  %1451 = vmatprep.subr.bf16.mxu0 0
  %1452 = vmatpush1.bf16.msra.mxu0 0
  %1453 = vmatprep.subr.bf16.mxu0 0
  %1454 = vmatpush1.bf16.msra.mxu0 0
  %1455 = vmatprep.subr.bf16.mxu0 0
  %1456 = vmatpush1.bf16.msra.mxu0 0
  %1457 = vmatprep.subr.bf16.mxu0 0
  %1458 = vmatpush1.bf16.msra.mxu0 0
  %1459 = vmatprep.subr.bf16.mxu0 0
  %1460 = vmatpush1.bf16.msra.mxu0 0
  %1461 = vmatprep.subr.bf16.mxu0 0
  %1462 = vmatpush1.bf16.msra.mxu0 0
  %1463 = vmatprep.subr.bf16.mxu0 0
  %1464 = vmatpush1.bf16.msra.mxu0 0
  %1465 = vmatprep.subr.bf16.mxu0 0
  %1466 = vmatpush1.bf16.msra.mxu0 0
  %1467 = vmatprep.mubr.bf16.mxu0 0
  %1468 = vmatmul.mubr.bf16.gmra.mrb[0].mxu0 %v1427
  %v1469 = vpop.f32.mrb[0].mxu0
  %v1470 = vadd.f32 %v1431, %v1469
  %v1471 = vpop.f32.mrb[0].mxu0
  %v1472 = vadd.f32 %v1432, %v1471
  %v1473 = vpop.f32.mrb[0].mxu0
  %v1474 = vpop.f32.mrb[0].mxu0
  %1475 = vdwg.mxu0
  %1476 = vmatprep.subr.bf16.mxu0 %v577
  %1477 = vmatpush1.bf16.msra.mxu0 %v576
  %1478 = vmatprep.subr.bf16.mxu0 %v581
  %1479 = vmatpush1.bf16.msra.mxu0 %v580
  %1480 = vmatprep.subr.bf16.mxu0 %v585
  %1481 = vmatpush1.bf16.msra.mxu0 %v584
  %1482 = vmatprep.subr.bf16.mxu0 %v589
  %1483 = vmatpush1.bf16.msra.mxu0 %v588
  %1484 = vmatprep.subr.bf16.mxu0 %v593
  %1485 = vmatpush1.bf16.msra.mxu0 %v592
  %1486 = vmatprep.subr.bf16.mxu0 %v597
  %1487 = vmatpush1.bf16.msra.mxu0 %v596
  %1488 = vmatprep.subr.bf16.mxu0 %v601
  %1489 = vmatpush1.bf16.msra.mxu0 %v600
  %1490 = vmatprep.subr.bf16.mxu0 %v605
  %1491 = vmatpush1.bf16.msra.mxu0 %v604
  %1492 = vmatprep.subr.bf16.mxu0 0
  %1493 = vmatpush1.bf16.msra.mxu0 0
  %1494 = vmatprep.subr.bf16.mxu0 0
  %1495 = vmatpush1.bf16.msra.mxu0 0
  %1496 = vmatprep.subr.bf16.mxu0 0
  %1497 = vmatpush1.bf16.msra.mxu0 0
  %1498 = vmatprep.subr.bf16.mxu0 0
  %1499 = vmatpush1.bf16.msra.mxu0 0
  %1500 = vmatprep.subr.bf16.mxu0 0
  %1501 = vmatpush1.bf16.msra.mxu0 0
  %1502 = vmatprep.subr.bf16.mxu0 0
  %1503 = vmatpush1.bf16.msra.mxu0 0
  %1504 = vmatprep.subr.bf16.mxu0 0
  %1505 = vmatpush1.bf16.msra.mxu0 0
  %1506 = vmatprep.subr.bf16.mxu0 0
  %1507 = vmatpush1.bf16.msra.mxu0 0
  %1508 = vmatprep.mubr.bf16.mxu0 0
  %1509 = vmatmul.mubr.bf16.gmra.mrb[0].mxu0 %v1427
  %v1510 = vpop.f32.mrb[0].mxu0
  %v1511 = vadd.f32 %v1433, %v1510
  %v1512 = vpop.f32.mrb[0].mxu0
  %v1513 = vadd.f32 %v1434, %v1512
  %v1514 = vpop.f32.mrb[0].mxu0
  %v1515 = vpop.f32.mrb[0].mxu0
  %1516 = vdwg.mxu0
  %v1517 = vxor.u32 %v1470, 2147483648
  %v1518 = vmul.f32 %v1517, 1.442695
  %v1519 = vpow.pop %v1518
  %v1520 = vadd.f32 %v1519, 1.0
  %v1521 = vrcp.pop %v1520
  %v1522 = vmul.f32 1.0, %v1521
  %v1523 = vxor.u32 %v1472, 2147483648
  %v1524 = vmul.f32 %v1523, 1.442695
  %v1525 = vpow.pop %v1524
  %v1526 = vadd.f32 %v1525, 1.0
  %v1527 = vrcp.pop %v1526
  %v1528 = vmul.f32 1.0, %v1527
  %v1529 = vtanh.pop %v1511
  %v1530 = vxor.u32 %v1513, 2147483648
  %v1531 = vmul.f32 %v1530, 1.442695
  %v1532 = vpow.pop %v1531
  %v1533 = vadd.f32 %v1532, 1.0
  %v1534 = vrcp.pop %v1533
  %v1535 = vmul.f32 1.0, %v1534
  %v1536 = vmul.f32 %v1528, %v1424
  %v1537 = vmul.f32 %v1522, %v1529
  %v1538 = vadd.f32 %v1536, %v1537
  %v1539 = vtanh.pop %v1538
  %v1540 = vmul.f32 %v1535, %v1539
  %v1541 = vpack.c.bf16 %v1540, %v1540
  %s1542 = scalar_lea.vmem %s4, 28
  %1543 = vst [vmem:[%s1542] sm:$0xf] %v1541
  // Predicated region
  $region18: #{decoder_rnn_forward.2} parent=0 // pred_check
    _
  $region19: #{decoder_rnn_forward.2} parent=0 // pred_check_branch
    %1545 = sbr.rel (0) target = $region21
  $region20: #{decoder_rnn_forward.2} parent=0 // pred_region
    _
  $region21: #{decoder_rnn_forward.2} parent=0 // pred_fallthru
    _
  // Predicated region
  $region22: #{decoder_rnn_forward.2} parent=0 // pred_check
    _
  $region23: #{decoder_rnn_forward.2} parent=0 // pred_check_branch
    %1547 = sbr.rel (0) target = $region25
  $region24: #{decoder_rnn_forward.2} parent=0 // pred_region
    _
  $region25: #{decoder_rnn_forward.2} parent=0 // pred_fallthru
    _

</llo_original>
